<compile_context>
chip_gen: v6e
topology: v6e:2x2x1
jax: 0.10.0
libtpu: 0.0.40
codegen_flags: <defaults>
</compile_context>

<pallas_src>
import functools
import math

import jax
import jax.numpy as jnp
from jax.experimental import pallas as pl
from jax.experimental.pallas import tpu as pltpu


# ------------------------------ fused kernel --------------------------------

def _encoder_layer_kernel(
    x_ref, pos_ref,
    wqk_ref, bqk_ref, wv_ref, bv_ref,
    wo_ref, bo_ref,
    w1_ref, b1_ref, w2_ref, b2_ref,
    g1_ref, be1_ref, g2_ref, be2_ref,
    o_ref,
    *, S, nhead, hd, eps,
):
    """One grid step = one batch element; everything below is (S, ...)-shaped."""
    D = nhead * hd
    f32 = jnp.float32

    x = x_ref[0].astype(f32)                       # (S, D)   value path (src)
    qk_in = x + pos_ref[0].astype(f32)             # with_pos_embed(src, pos)

    # ---- fused Q|K projection (one MXU pass), V projection ------------------
    # 1/sqrt(hd) is already folded into the Q half of wqk/bqk.
    qk = jnp.dot(qk_in, wqk_ref[...], preferred_element_type=f32) + bqk_ref[...]  # (S, 2D)
    v = jnp.dot(x, wv_ref[...], preferred_element_type=f32) + bv_ref[...]         # (S, D)

    # ---- multi-head attention: heads as a batch dim, single contraction -----
    q3 = qk[:, :D].reshape(S, nhead, hd)
    k3 = qk[:, D:].reshape(S, nhead, hd)
    v3 = v.reshape(S, nhead, hd)

    s = jnp.einsum('qhd,khd->hqk', q3, k3, preferred_element_type=f32)  # (H, S, S)
    s = s - jnp.max(s, axis=-1, keepdims=True)
    p = jnp.exp(s)
    p = p * pl.reciprocal(jnp.sum(p, axis=-1, keepdims=True))           # exact recip
    attn = jnp.einsum('hqk,khd->qhd', p, v3,
                      preferred_element_type=f32).reshape(S, D)         # (S, D)

    # ---- out-projection with fused residual + LayerNorm1 epilogue -----------
    attn_out = jnp.dot(attn, wo_ref[...], preferred_element_type=f32) + bo_ref[...]
    z1 = x + attn_out                                 # dropout1 = identity
    mu1 = jnp.mean(z1, axis=-1, keepdims=True)
    var1 = jnp.mean((z1 - mu1) ** 2, axis=-1, keepdims=True)
    h1 = (z1 - mu1) * jax.lax.rsqrt(var1 + eps) * g1_ref[...] + be1_ref[...]

    # ---- feed-forward (bias + ReLU fused), residual + LayerNorm2 -------------
    ff = jnp.dot(h1, w1_ref[...], preferred_element_type=f32) + b1_ref[...]
    ff = jnp.maximum(ff, 0.0)                         # relu; dropout = identity
    ff = jnp.dot(ff, w2_ref[...], preferred_element_type=f32) + b2_ref[...]

    z2 = h1 + ff                                      # dropout2 = identity
    mu2 = jnp.mean(z2, axis=-1, keepdims=True)
    var2 = jnp.mean((z2 - mu2) ** 2, axis=-1, keepdims=True)
    out = (z2 - mu2) * jax.lax.rsqrt(var2 + eps) * g2_ref[...] + be2_ref[...]

    o_ref[0] = out.astype(o_ref.dtype)


# ------------------------- param prep (hoisted, once) ------------------------

def prepare_params(p, d_model, nhead):
    """Pre-transpose weights to (Din, Dout), fuse q|k, fold 1/sqrt(hd) into Wq/bq."""
    D = d_model
    hd = D // nhead
    scale = 1.0 / math.sqrt(hd)
    wq = p["in_w"][:D].T * scale                 # (D, D)   scale folded into Wq
    bq = p["in_b"][:D] * scale
    wk = p["in_w"][D:2 * D].T
    bk = p["in_b"][D:2 * D]
    return {
        "wqk": jnp.concatenate([wq, wk], axis=1),                 # (D, 2D)
        "bqk": jnp.concatenate([bq, bk])[None, :],                # (1, 2D)
        "wv": p["in_w"][2 * D:].T, "bv": p["in_b"][2 * D:][None, :],
        "wo": p["out_w"].T,        "bo": p["out_b"][None, :],
        "w1": p["w1"].T,           "b1": p["b1"][None, :],
        "w2": p["w2"].T,           "b2": p["b2"][None, :],
        "g1": p["ln1_g"][None, :], "be1": p["ln1_b"][None, :],
        "g2": p["ln2_g"][None, :], "be2": p["ln2_b"][None, :],
    }


# ------------------------- TransformerEncoderLayer --------------------------

def _const_map(b, *, nd):
    return (0,) * nd


def transformer_encoder_layer(src, pos, kp, nhead, eps=1e-5):
    """forward_post semantics (normalize_before=False); dropout = identity."""
    S, B, D = src.shape
    hd = D // nhead
    FF = kp["w1"].shape[1]

    # Batch-major so each grid step (one batch) reads a contiguous (S, D) block.
    # In a full model, keep activations batch-major so this transpose is paid
    # once per model, not per layer.
    xb = src.transpose(1, 0, 2)                       # (B, S, D)
    pb = pos.transpose(1, 0, 2)

    weights = (kp["wqk"], kp["bqk"], kp["wv"], kp["bv"],
               kp["wo"], kp["bo"], kp["w1"], kp["b1"], kp["w2"], kp["b2"],
               kp["g1"], kp["be1"], kp["g2"], kp["be2"])

    row_spec = pl.BlockSpec((1, S, D), lambda b: (b, 0, 0))
    in_specs = [row_spec, row_spec] + [
        pl.BlockSpec(w.shape, functools.partial(_const_map, nd=w.ndim))
        for w in weights
    ]

    # Advisory cost estimate so XLA schedules neighbors around the custom call.
    flops_per_batch = (2 * S * D * (2 * D)      # fused Q|K projection
                       + 2 * S * D * D          # V projection
                       + 2 * 2 * S * S * D      # scores + P@V
                       + 2 * S * D * D          # out projection
                       + 2 * 2 * S * D * FF)    # FFN
    flops = B * flops_per_batch
    transcendentals = B * (nhead * S * S + nhead * S + 2 * S)
    bytes_accessed = 4 * (3 * B * S * D + sum(int(w.size) for w in weights))

    out_b = pl.pallas_call(
        functools.partial(_encoder_layer_kernel,
                          S=S, nhead=nhead, hd=hd, eps=eps),
        out_shape=jax.ShapeDtypeStruct((B, S, D), src.dtype),
        grid=(B,),
        in_specs=in_specs,
        out_specs=row_spec,
        compiler_params=pltpu.CompilerParams(
            dimension_semantics=("parallel",)),     # uses both TCs on v7x
        cost_estimate=pl.CostEstimate(flops=flops,
                                      transcendentals=transcendentals,
                                      bytes_accessed=bytes_accessed),
    )(xb, pb, *weights)

    return out_b.transpose(1, 0, 2)


# ------------------------------- reference ----------------------------------

def reference(src, pos, p, nhead):
    S, B, D = src.shape
    hd = D // nhead
    x = src.reshape(S * B, D)
    qk = (src + pos).reshape(S * B, D)
    q = qk @ p["in_w"][:D].T + p["in_b"][:D]
    k = qk @ p["in_w"][D:2 * D].T + p["in_b"][D:2 * D]
    v = x @ p["in_w"][2 * D:].T + p["in_b"][2 * D:]
    sh = lambda t: t.reshape(S, B * nhead, hd).transpose(1, 0, 2)
    q, k, v = sh(q) * (hd ** -0.5), sh(k), sh(v)
    s = jnp.einsum("bqd,bkd->bqk", q, k)
    a = jax.nn.softmax(s, axis=-1)
    o = jnp.einsum("bqk,bkd->bqd", a, v).transpose(1, 0, 2).reshape(S * B, D)
    o = o @ p["out_w"].T + p["out_b"]

    def ln(z, g, b):
        mu = z.mean(-1, keepdims=True)
        var = ((z - mu) ** 2).mean(-1, keepdims=True)
        return (z - mu) / jnp.sqrt(var + 1e-5) * g + b

    h1 = ln(x + o, p["ln1_g"], p["ln1_b"])
    ff = jnp.maximum(h1 @ p["w1"].T + p["b1"], 0.0) @ p["w2"].T + p["b2"]
    return ln(h1 + ff, p["ln2_g"], p["ln2_b"]).reshape(S, B, D)


# --------------------------------- main --------------------------------------

if __name__ == "__main__":
    S, B, D, H, FF = 8, 2, 32, 4, 64   # seq, batch, d_model, nhead, dim_feedforward
    key = jax.random.PRNGKey(0)
    ks = jax.random.split(key, 12)

    params = {
        "in_w":  0.05 * jax.random.normal(ks[0], (3 * D, D), jnp.float32),
        "in_b":  0.05 * jax.random.normal(ks[1], (3 * D,), jnp.float32),
        "out_w": 0.05 * jax.random.normal(ks[2], (D, D), jnp.float32),
        "out_b": 0.05 * jax.random.normal(ks[3], (D,), jnp.float32),
        "w1":    0.05 * jax.random.normal(ks[4], (FF, D), jnp.float32),
        "b1":    0.05 * jax.random.normal(ks[5], (FF,), jnp.float32),
        "w2":    0.05 * jax.random.normal(ks[6], (D, FF), jnp.float32),
        "b2":    0.05 * jax.random.normal(ks[7], (D,), jnp.float32),
        "ln1_g": jnp.ones((D,), jnp.float32),
        "ln1_b": jnp.zeros((D,), jnp.float32),
        "ln2_g": jnp.ones((D,), jnp.float32),
        "ln2_b": jnp.zeros((D,), jnp.float32),
    }

    src = jax.random.normal(ks[8], (S, B, D), jnp.float32)
    pos = jax.random.normal(ks[9], (S, B, D), jnp.float32)

    # param prep hoisted out of the forward pass (done once)
    kparams = prepare_params(params, D, H)

    fwd = jax.jit(functools.partial(transformer_encoder_layer, nhead=H))
    out = fwd(src, pos, kparams)
    out = jax.block_until_ready(out)

    ref = reference(src, pos, params, H)
    assert out.shape == (S, B, D)
    assert jnp.allclose(out, ref, rtol=1e-4, atol=1e-4), "mismatch vs reference"

    print("KERNEL_OK")
</pallas_src>

<mosaic_0001>
module attributes {stable_mosaic.version = 11 : i64} {
  func.func @_encoder_layer_kernel(%arg0: i32, %arg1: memref<1x8x32xf32, #tpu.memory_space<vmem>>, %arg2: memref<1x8x32xf32, #tpu.memory_space<vmem>>, %arg3: memref<32x64xf32, #tpu.memory_space<vmem>>, %arg4: memref<1x64xf32, #tpu.memory_space<vmem>>, %arg5: memref<32x32xf32, #tpu.memory_space<vmem>>, %arg6: memref<1x32xf32, #tpu.memory_space<vmem>>, %arg7: memref<32x32xf32, #tpu.memory_space<vmem>>, %arg8: memref<1x32xf32, #tpu.memory_space<vmem>>, %arg9: memref<32x64xf32, #tpu.memory_space<vmem>>, %arg10: memref<1x64xf32, #tpu.memory_space<vmem>>, %arg11: memref<64x32xf32, #tpu.memory_space<vmem>>, %arg12: memref<1x32xf32, #tpu.memory_space<vmem>>, %arg13: memref<1x32xf32, #tpu.memory_space<vmem>>, %arg14: memref<1x32xf32, #tpu.memory_space<vmem>>, %arg15: memref<1x32xf32, #tpu.memory_space<vmem>>, %arg16: memref<1x32xf32, #tpu.memory_space<vmem>>, %arg17: memref<1x8x32xf32, #tpu.memory_space<vmem>>) attributes {dimension_semantics = [#tpu.dimension_semantics<parallel>], iteration_bounds = array<i64: 2>, scalar_prefetch = 0 : i64, scratch_operands = 0 : i64, tpu.core_type = #tpu.core_type<tc>, window_params = [{transform_indices = @transform_0, window_bounds = array<i64: 1, 8, 32>}, {transform_indices = @transform_1, window_bounds = array<i64: 1, 8, 32>}, {pipeline_mode = #tpu.pipeline_mode<synchronous>, transform_indices = @transform_2, window_bounds = array<i64: 32, 64>}, {pipeline_mode = #tpu.pipeline_mode<synchronous>, transform_indices = @transform_3, window_bounds = array<i64: 1, 64>}, {pipeline_mode = #tpu.pipeline_mode<synchronous>, transform_indices = @transform_4, window_bounds = array<i64: 32, 32>}, {pipeline_mode = #tpu.pipeline_mode<synchronous>, transform_indices = @transform_5, window_bounds = array<i64: 1, 32>}, {pipeline_mode = #tpu.pipeline_mode<synchronous>, transform_indices = @transform_6, window_bounds = array<i64: 32, 32>}, {pipeline_mode = #tpu.pipeline_mode<synchronous>, transform_indices = @transform_7, window_bounds = array<i64: 1, 32>}, {pipeline_mode = #tpu.pipeline_mode<synchronous>, transform_indices = @transform_8, window_bounds = array<i64: 32, 64>}, {pipeline_mode = #tpu.pipeline_mode<synchronous>, transform_indices = @transform_9, window_bounds = array<i64: 1, 64>}, {pipeline_mode = #tpu.pipeline_mode<synchronous>, transform_indices = @transform_10, window_bounds = array<i64: 64, 32>}, {pipeline_mode = #tpu.pipeline_mode<synchronous>, transform_indices = @transform_11, window_bounds = array<i64: 1, 32>}, {pipeline_mode = #tpu.pipeline_mode<synchronous>, transform_indices = @transform_12, window_bounds = array<i64: 1, 32>}, {pipeline_mode = #tpu.pipeline_mode<synchronous>, transform_indices = @transform_13, window_bounds = array<i64: 1, 32>}, {pipeline_mode = #tpu.pipeline_mode<synchronous>, transform_indices = @transform_14, window_bounds = array<i64: 1, 32>}, {pipeline_mode = #tpu.pipeline_mode<synchronous>, transform_indices = @transform_15, window_bounds = array<i64: 1, 32>}, {transform_indices = @transform_16, window_bounds = array<i64: 1, 8, 32>}]} {
    %c0 = arith.constant 0 : index
    %c0_0 = arith.constant 0 : index
    %c0_1 = arith.constant 0 : index
    %0 = vector.load %arg1[%c0, %c0_0, %c0_1] : memref<1x8x32xf32, #tpu.memory_space<vmem>>, vector<1x8x32xf32>
    %1 = vector.shape_cast %0 : vector<1x8x32xf32> to vector<8x32xf32>
    %c0_2 = arith.constant 0 : index
    %c0_3 = arith.constant 0 : index
    %c0_4 = arith.constant 0 : index
    %2 = vector.load %arg2[%c0_2, %c0_3, %c0_4] : memref<1x8x32xf32, #tpu.memory_space<vmem>>, vector<1x8x32xf32>
    %3 = vector.shape_cast %2 : vector<1x8x32xf32> to vector<8x32xf32>
    %4 = arith.addf %1, %3 : vector<8x32xf32>
    %c0_5 = arith.constant 0 : index
    %c0_6 = arith.constant 0 : index
    %5 = vector.load %arg3[%c0_5, %c0_6] : memref<32x64xf32, #tpu.memory_space<vmem>>, vector<32x64xf32>
    %cst = arith.constant dense<0.000000e+00> : vector<8x64xf32>
    %6 = tpu.matmul %4, %5, %cst {dimension_numbers = #tpu.dot_dimension_numbers<[1], [0], [0], [1], [0, 0, 1, 1], [], []>} : vector<8x32xf32>, vector<32x64xf32>, vector<8x64xf32> -> vector<8x64xf32>
    %c0_7 = arith.constant 0 : index
    %c0_8 = arith.constant 0 : index
    %7 = vector.load %arg4[%c0_7, %c0_8] : memref<1x64xf32, #tpu.memory_space<vmem>>, vector<1x64xf32>
    %8 = vector.broadcast %7 : vector<1x64xf32> to vector<8x64xf32>
    %9 = arith.addf %6, %8 : vector<8x64xf32>
    %c0_9 = arith.constant 0 : index
    %c0_10 = arith.constant 0 : index
    %10 = vector.load %arg5[%c0_9, %c0_10] : memref<32x32xf32, #tpu.memory_space<vmem>>, vector<32x32xf32>
    %cst_11 = arith.constant dense<0.000000e+00> : vector<8x32xf32>
    %11 = tpu.matmul %1, %10, %cst_11 {dimension_numbers = #tpu.dot_dimension_numbers<[1], [0], [0], [1], [0, 0, 1, 1], [], []>} : vector<8x32xf32>, vector<32x32xf32>, vector<8x32xf32> -> vector<8x32xf32>
    %c0_12 = arith.constant 0 : index
    %c0_13 = arith.constant 0 : index
    %12 = vector.load %arg6[%c0_12, %c0_13] : memref<1x32xf32, #tpu.memory_space<vmem>>, vector<1x32xf32>
    %13 = vector.broadcast %12 : vector<1x32xf32> to vector<8x32xf32>
    %14 = arith.addf %11, %13 : vector<8x32xf32>
    %15 = vector.extract_strided_slice %9 {offsets = [0, 0], sizes = [8, 32], strides = [1, 1]} : vector<8x64xf32> to vector<8x32xf32>
    %16 = vector.shape_cast %15 : vector<8x32xf32> to vector<8x4x8xf32>
    %17 = vector.extract_strided_slice %9 {offsets = [0, 32], sizes = [8, 32], strides = [1, 1]} : vector<8x64xf32> to vector<8x32xf32>
    %18 = vector.shape_cast %17 : vector<8x32xf32> to vector<8x4x8xf32>
    %19 = vector.shape_cast %14 : vector<8x32xf32> to vector<8x4x8xf32>
    "tpu.trace_start"() <{level = 10 : i32, message = "qhd,khd->hqk"}> : () -> ()
    %cst_14 = arith.constant dense<0.000000e+00> : vector<4x8x8xf32>
    %20 = tpu.matmul %16, %18, %cst_14 {dimension_numbers = #tpu.dot_dimension_numbers<[2], [2], [0], [0], [0, 1, 0, 0, 1, 0], [1], [1]>} : vector<8x4x8xf32>, vector<8x4x8xf32>, vector<4x8x8xf32> -> vector<4x8x8xf32>
    "tpu.trace_stop"() : () -> ()
    %cst_15 = arith.constant dense<0xFF800000> : vector<4x8xf32>
    %21 = vector.multi_reduction <maximumf>, %20, %cst_15 [2] : vector<4x8x8xf32> to vector<4x8xf32>
    %22 = vector.shape_cast %21 : vector<4x8xf32> to vector<4x8x1xf32>
    %23 = vector.broadcast %22 : vector<4x8x1xf32> to vector<4x8x8xf32>
    %24 = arith.subf %20, %23 : vector<4x8x8xf32>
    %25 = math.exp %24 : vector<4x8x8xf32>
    %cst_16 = arith.constant dense<0.000000e+00> : vector<4x8xf32>
    %26 = vector.multi_reduction <add>, %25, %cst_16 [2] : vector<4x8x8xf32> to vector<4x8xf32>
    %27 = vector.shape_cast %26 : vector<4x8xf32> to vector<4x8x1xf32>
    %28 = tpu.reciprocal %27 : vector<4x8x1xf32> -> vector<4x8x1xf32>
    %29 = vector.broadcast %28 : vector<4x8x1xf32> to vector<4x8x8xf32>
    %30 = arith.mulf %25, %29 : vector<4x8x8xf32>
    "tpu.trace_start"() <{level = 10 : i32, message = "hqk,khd->qhd"}> : () -> ()
    %cst_17 = arith.constant dense<0.000000e+00> : vector<4x8x8xf32>
    %31 = tpu.matmul %19, %30, %cst_17 {dimension_numbers = #tpu.dot_dimension_numbers<[0], [2], [2], [1], [0, 1, 0, 2, 1, 1], [1], [0]>} : vector<8x4x8xf32>, vector<4x8x8xf32>, vector<4x8x8xf32> -> vector<4x8x8xf32>
    %32 = tpu.transpose %31, [2, 0, 1] : vector<4x8x8xf32> -> vector<8x4x8xf32>
    "tpu.trace_stop"() : () -> ()
    %33 = vector.shape_cast %32 : vector<8x4x8xf32> to vector<8x32xf32>
    %c0_18 = arith.constant 0 : index
    %c0_19 = arith.constant 0 : index
    %34 = vector.load %arg7[%c0_18, %c0_19] : memref<32x32xf32, #tpu.memory_space<vmem>>, vector<32x32xf32>
    %cst_20 = arith.constant dense<0.000000e+00> : vector<8x32xf32>
    %35 = tpu.matmul %33, %34, %cst_20 {dimension_numbers = #tpu.dot_dimension_numbers<[1], [0], [0], [1], [0, 0, 1, 1], [], []>} : vector<8x32xf32>, vector<32x32xf32>, vector<8x32xf32> -> vector<8x32xf32>
    %c0_21 = arith.constant 0 : index
    %c0_22 = arith.constant 0 : index
    %36 = vector.load %arg8[%c0_21, %c0_22] : memref<1x32xf32, #tpu.memory_space<vmem>>, vector<1x32xf32>
    %37 = vector.broadcast %36 : vector<1x32xf32> to vector<8x32xf32>
    %38 = arith.addf %35, %37 : vector<8x32xf32>
    %39 = arith.addf %1, %38 : vector<8x32xf32>
    %cst_23 = arith.constant dense<0.000000e+00> : vector<8xf32>
    %40 = vector.multi_reduction <add>, %39, %cst_23 [1] : vector<8x32xf32> to vector<8xf32>
    %41 = vector.shape_cast %40 : vector<8xf32> to vector<8x1xf32>
    %cst_24 = arith.constant 3.200000e+01 : f32
    %42 = vector.broadcast %cst_24 : f32 to vector<8x1xf32>
    %43 = arith.divf %41, %42 : vector<8x1xf32>
    %44 = vector.broadcast %43 : vector<8x1xf32> to vector<8x32xf32>
    %45 = arith.subf %39, %44 : vector<8x32xf32>
    %46 = arith.mulf %45, %45 : vector<8x32xf32>
    %cst_25 = arith.constant dense<0.000000e+00> : vector<8xf32>
    %47 = vector.multi_reduction <add>, %46, %cst_25 [1] : vector<8x32xf32> to vector<8xf32>
    %48 = vector.shape_cast %47 : vector<8xf32> to vector<8x1xf32>
    %cst_26 = arith.constant 3.200000e+01 : f32
    %49 = vector.broadcast %cst_26 : f32 to vector<8x1xf32>
    %50 = arith.divf %48, %49 : vector<8x1xf32>
    %51 = vector.broadcast %43 : vector<8x1xf32> to vector<8x32xf32>
    %52 = arith.subf %39, %51 : vector<8x32xf32>
    %cst_27 = arith.constant 9.99999974E-6 : f32
    %53 = vector.broadcast %cst_27 : f32 to vector<8x1xf32>
    %54 = arith.addf %50, %53 : vector<8x1xf32>
    %55 = math.rsqrt %54 : vector<8x1xf32>
    %56 = vector.broadcast %55 : vector<8x1xf32> to vector<8x32xf32>
    %57 = arith.mulf %52, %56 : vector<8x32xf32>
    %c0_28 = arith.constant 0 : index
    %c0_29 = arith.constant 0 : index
    %58 = vector.load %arg13[%c0_28, %c0_29] : memref<1x32xf32, #tpu.memory_space<vmem>>, vector<1x32xf32>
    %59 = vector.broadcast %58 : vector<1x32xf32> to vector<8x32xf32>
    %60 = arith.mulf %57, %59 : vector<8x32xf32>
    %c0_30 = arith.constant 0 : index
    %c0_31 = arith.constant 0 : index
    %61 = vector.load %arg14[%c0_30, %c0_31] : memref<1x32xf32, #tpu.memory_space<vmem>>, vector<1x32xf32>
    %62 = vector.broadcast %61 : vector<1x32xf32> to vector<8x32xf32>
    %63 = arith.addf %60, %62 : vector<8x32xf32>
    %c0_32 = arith.constant 0 : index
    %c0_33 = arith.constant 0 : index
    %64 = vector.load %arg9[%c0_32, %c0_33] : memref<32x64xf32, #tpu.memory_space<vmem>>, vector<32x64xf32>
    %cst_34 = arith.constant dense<0.000000e+00> : vector<8x64xf32>
    %65 = tpu.matmul %63, %64, %cst_34 {dimension_numbers = #tpu.dot_dimension_numbers<[1], [0], [0], [1], [0, 0, 1, 1], [], []>} : vector<8x32xf32>, vector<32x64xf32>, vector<8x64xf32> -> vector<8x64xf32>
    %c0_35 = arith.constant 0 : index
    %c0_36 = arith.constant 0 : index
    %66 = vector.load %arg10[%c0_35, %c0_36] : memref<1x64xf32, #tpu.memory_space<vmem>>, vector<1x64xf32>
    %67 = vector.broadcast %66 : vector<1x64xf32> to vector<8x64xf32>
    %68 = arith.addf %65, %67 : vector<8x64xf32>
    %cst_37 = arith.constant 0.000000e+00 : f32
    %69 = vector.broadcast %cst_37 : f32 to vector<8x64xf32>
    %70 = arith.maximumf %68, %69 : vector<8x64xf32>
    %c0_38 = arith.constant 0 : index
    %c0_39 = arith.constant 0 : index
    %71 = vector.load %arg11[%c0_38, %c0_39] : memref<64x32xf32, #tpu.memory_space<vmem>>, vector<64x32xf32>
    %cst_40 = arith.constant dense<0.000000e+00> : vector<8x32xf32>
    %72 = tpu.matmul %70, %71, %cst_40 {dimension_numbers = #tpu.dot_dimension_numbers<[1], [0], [0], [1], [0, 0, 1, 1], [], []>} : vector<8x64xf32>, vector<64x32xf32>, vector<8x32xf32> -> vector<8x32xf32>
    %c0_41 = arith.constant 0 : index
    %c0_42 = arith.constant 0 : index
    %73 = vector.load %arg12[%c0_41, %c0_42] : memref<1x32xf32, #tpu.memory_space<vmem>>, vector<1x32xf32>
    %74 = vector.broadcast %73 : vector<1x32xf32> to vector<8x32xf32>
    %75 = arith.addf %72, %74 : vector<8x32xf32>
    %76 = arith.addf %63, %75 : vector<8x32xf32>
    %cst_43 = arith.constant dense<0.000000e+00> : vector<8xf32>
    %77 = vector.multi_reduction <add>, %76, %cst_43 [1] : vector<8x32xf32> to vector<8xf32>
    %78 = vector.shape_cast %77 : vector<8xf32> to vector<8x1xf32>
    %cst_44 = arith.constant 3.200000e+01 : f32
    %79 = vector.broadcast %cst_44 : f32 to vector<8x1xf32>
    %80 = arith.divf %78, %79 : vector<8x1xf32>
    %81 = vector.broadcast %80 : vector<8x1xf32> to vector<8x32xf32>
    %82 = arith.subf %76, %81 : vector<8x32xf32>
    %83 = arith.mulf %82, %82 : vector<8x32xf32>
    %cst_45 = arith.constant dense<0.000000e+00> : vector<8xf32>
    %84 = vector.multi_reduction <add>, %83, %cst_45 [1] : vector<8x32xf32> to vector<8xf32>
    %85 = vector.shape_cast %84 : vector<8xf32> to vector<8x1xf32>
    %cst_46 = arith.constant 3.200000e+01 : f32
    %86 = vector.broadcast %cst_46 : f32 to vector<8x1xf32>
    %87 = arith.divf %85, %86 : vector<8x1xf32>
    %88 = vector.broadcast %80 : vector<8x1xf32> to vector<8x32xf32>
    %89 = arith.subf %76, %88 : vector<8x32xf32>
    %cst_47 = arith.constant 9.99999974E-6 : f32
    %90 = vector.broadcast %cst_47 : f32 to vector<8x1xf32>
    %91 = arith.addf %87, %90 : vector<8x1xf32>
    %92 = math.rsqrt %91 : vector<8x1xf32>
    %93 = vector.broadcast %92 : vector<8x1xf32> to vector<8x32xf32>
    %94 = arith.mulf %89, %93 : vector<8x32xf32>
    %c0_48 = arith.constant 0 : index
    %c0_49 = arith.constant 0 : index
    %95 = vector.load %arg15[%c0_48, %c0_49] : memref<1x32xf32, #tpu.memory_space<vmem>>, vector<1x32xf32>
    %96 = vector.broadcast %95 : vector<1x32xf32> to vector<8x32xf32>
    %97 = arith.mulf %94, %96 : vector<8x32xf32>
    %c0_50 = arith.constant 0 : index
    %c0_51 = arith.constant 0 : index
    %98 = vector.load %arg16[%c0_50, %c0_51] : memref<1x32xf32, #tpu.memory_space<vmem>>, vector<1x32xf32>
    %99 = vector.broadcast %98 : vector<1x32xf32> to vector<8x32xf32>
    %100 = arith.addf %97, %99 : vector<8x32xf32>
    %c0_52 = arith.constant 0 : index
    %c0_53 = arith.constant 0 : index
    %c0_54 = arith.constant 0 : index
    %101 = vector.load %arg17[%c0_52, %c0_53, %c0_54] : memref<1x8x32xf32, #tpu.memory_space<vmem>>, vector<1x8x32xf32>
    %102 = vector.shape_cast %101 : vector<1x8x32xf32> to vector<8x32xf32>
    %103 = vector.shape_cast %100 : vector<8x32xf32> to vector<1x8x32xf32>
    tpu.vector_store %arg17[%c0_52, %c0_53, %c0_54], %103 {strides = array<i32>} : memref<1x8x32xf32, #tpu.memory_space<vmem>>, vector<1x8x32xf32>,
    return
  }
  func.func @transform_0(%arg0: i32) -> (i32, i32, i32) {
    %c0_i32 = arith.constant 0 : i32
    %c0_i32_0 = arith.constant 0 : i32
    %c0_i32_1 = arith.constant 0 : i32
    return %arg0, %c0_i32, %c0_i32_0 : i32, i32, i32
  }
  func.func @transform_1(%arg0: i32) -> (i32, i32, i32) {
    %c0_i32 = arith.constant 0 : i32
    %c0_i32_0 = arith.constant 0 : i32
    %c0_i32_1 = arith.constant 0 : i32
    return %arg0, %c0_i32, %c0_i32_0 : i32, i32, i32
  }
  func.func @transform_2(%arg0: i32) -> (i32, i32) {
    %c0_i32 = arith.constant 0 : i32
    %c0_i32_0 = arith.constant 0 : i32
    %c0_i32_1 = arith.constant 0 : i32
    return %c0_i32, %c0_i32_0 : i32, i32
  }
  func.func @transform_3(%arg0: i32) -> (i32, i32) {
    %c0_i32 = arith.constant 0 : i32
    %c0_i32_0 = arith.constant 0 : i32
    %c0_i32_1 = arith.constant 0 : i32
    return %c0_i32, %c0_i32_0 : i32, i32
  }
  func.func @transform_4(%arg0: i32) -> (i32, i32) {
    %c0_i32 = arith.constant 0 : i32
    %c0_i32_0 = arith.constant 0 : i32
    %c0_i32_1 = arith.constant 0 : i32
    return %c0_i32, %c0_i32_0 : i32, i32
  }
  func.func @transform_5(%arg0: i32) -> (i32, i32) {
    %c0_i32 = arith.constant 0 : i32
    %c0_i32_0 = arith.constant 0 : i32
    %c0_i32_1 = arith.constant 0 : i32
    return %c0_i32, %c0_i32_0 : i32, i32
  }
  func.func @transform_6(%arg0: i32) -> (i32, i32) {
    %c0_i32 = arith.constant 0 : i32
    %c0_i32_0 = arith.constant 0 : i32
    %c0_i32_1 = arith.constant 0 : i32
    return %c0_i32, %c0_i32_0 : i32, i32
  }
  func.func @transform_7(%arg0: i32) -> (i32, i32) {
    %c0_i32 = arith.constant 0 : i32
    %c0_i32_0 = arith.constant 0 : i32
    %c0_i32_1 = arith.constant 0 : i32
    return %c0_i32, %c0_i32_0 : i32, i32
  }
  func.func @transform_8(%arg0: i32) -> (i32, i32) {
    %c0_i32 = arith.constant 0 : i32
    %c0_i32_0 = arith.constant 0 : i32
    %c0_i32_1 = arith.constant 0 : i32
    return %c0_i32, %c0_i32_0 : i32, i32
  }
  func.func @transform_9(%arg0: i32) -> (i32, i32) {
    %c0_i32 = arith.constant 0 : i32
    %c0_i32_0 = arith.constant 0 : i32
    %c0_i32_1 = arith.constant 0 : i32
    return %c0_i32, %c0_i32_0 : i32, i32
  }
  func.func @transform_10(%arg0: i32) -> (i32, i32) {
    %c0_i32 = arith.constant 0 : i32
    %c0_i32_0 = arith.constant 0 : i32
    %c0_i32_1 = arith.constant 0 : i32
    return %c0_i32, %c0_i32_0 : i32, i32
  }
  func.func @transform_11(%arg0: i32) -> (i32, i32) {
    %c0_i32 = arith.constant 0 : i32
    %c0_i32_0 = arith.constant 0 : i32
    %c0_i32_1 = arith.constant 0 : i32
    return %c0_i32, %c0_i32_0 : i32, i32
  }
  func.func @transform_12(%arg0: i32) -> (i32, i32) {
    %c0_i32 = arith.constant 0 : i32
    %c0_i32_0 = arith.constant 0 : i32
    %c0_i32_1 = arith.constant 0 : i32
    return %c0_i32, %c0_i32_0 : i32, i32
  }
  func.func @transform_13(%arg0: i32) -> (i32, i32) {
    %c0_i32 = arith.constant 0 : i32
    %c0_i32_0 = arith.constant 0 : i32
    %c0_i32_1 = arith.constant 0 : i32
    return %c0_i32, %c0_i32_0 : i32, i32
  }
  func.func @transform_14(%arg0: i32) -> (i32, i32) {
    %c0_i32 = arith.constant 0 : i32
    %c0_i32_0 = arith.constant 0 : i32
    %c0_i32_1 = arith.constant 0 : i32
    return %c0_i32, %c0_i32_0 : i32, i32
  }
  func.func @transform_15(%arg0: i32) -> (i32, i32) {
    %c0_i32 = arith.constant 0 : i32
    %c0_i32_0 = arith.constant 0 : i32
    %c0_i32_1 = arith.constant 0 : i32
    return %c0_i32, %c0_i32_0 : i32, i32
  }
  func.func @transform_16(%arg0: i32) -> (i32, i32, i32) {
    %c0_i32 = arith.constant 0 : i32
    %c0_i32_0 = arith.constant 0 : i32
    %c0_i32_1 = arith.constant 0 : i32
    return %arg0, %c0_i32, %c0_i32_0 : i32, i32, i32
  }
}

</mosaic_0001>

<llo_original>
// kernel: transformer_encoder_layer.1
$region0: #{transformer_encoder_layer.1}
  #allocation0 [shape = 'u32[]', space=smem, size = 0x4, offset = 0x4, fixed_abs, tag = 'smem constant byte address 0x4 - core index']
  #allocation1 [shape = 'u32[144,128]{1,0:T(1,128)}', space=vmem, size = 0x12000, scoped, tag = 'internal scratch']
  %s0 = inlined_call_operand.vmem [shape: f32[2,8,32], index: 0, kind: input, shape index: {}]
  %s1 = inlined_call_operand.vmem [shape: f32[2,8,32], index: 1, kind: input, shape index: {}]
  %s2 = inlined_call_operand.vmem [shape: f32[32,64], index: 2, kind: input, shape index: {}]
  %s3 = inlined_call_operand.vmem [shape: f32[1,64], index: 3, kind: input, shape index: {}]
  %s4 = inlined_call_operand.vmem [shape: f32[32,32], index: 4, kind: input, shape index: {}]
  %s5 = inlined_call_operand.vmem [shape: f32[1,32], index: 5, kind: input, shape index: {}]
  %s6 = inlined_call_operand.vmem [shape: f32[32,32], index: 6, kind: input, shape index: {}]
  %s7 = inlined_call_operand.vmem [shape: f32[1,32], index: 7, kind: input, shape index: {}]
  %s8 = inlined_call_operand.vmem [shape: f32[32,64], index: 8, kind: input, shape index: {}]
  %s9 = inlined_call_operand.vmem [shape: f32[1,64], index: 9, kind: input, shape index: {}]
  %s10 = inlined_call_operand.vmem [shape: f32[64,32], index: 10, kind: input, shape index: {}]
  %s11 = inlined_call_operand.vmem [shape: f32[1,32], index: 11, kind: input, shape index: {}]
  %s12 = inlined_call_operand.vmem [shape: f32[1,32], index: 12, kind: input, shape index: {}]
  %s13 = inlined_call_operand.vmem [shape: f32[1,32], index: 13, kind: input, shape index: {}]
  %s14 = inlined_call_operand.vmem [shape: f32[1,32], index: 14, kind: input, shape index: {}]
  %s15 = inlined_call_operand.vmem [shape: f32[1,32], index: 15, kind: input, shape index: {}]
  %s16 = inlined_call_operand.vmem [shape: f32[2,8,32], index: 16, kind: output, shape index: {}]
  %s17 = sld [smem:[#allocation0]]
  $region97: #{transformer_encoder_layer.1} parent=0
    _
  %s19 = ssub.s32 1, %s17
  %s20 = scalar_select 0, %s19, %s17
  loop: start=0, step=1, limit=4
  $region2: #{transformer_encoder_layer.1} parent=0 // loop_pre_header
    _
  $region3: #{transformer_encoder_layer.1} parent=0 // loop_header
    %s22 = sphi 0, %s26
    %p23 = scmp.ge.s32.totalorder %s22, 4
    %s32 = sphi 0, %s34
    %s35 = sphi 0, %s32
    %s36 = sphi 0, %s35
    %s52 = sphi 0, %s36
    %s58 = sphi 0, %s60
    %s61 = sphi 0, %s58
    %s62 = sphi 0, %s61
    %s78 = sphi 0, %s62
    %s82 = sphi 0, %s82
    %s84 = sphi 0, %s82
    %s85 = sphi 0, %s84
    %s99 = sphi 0, %s85
    %s103 = sphi 0, %s103
    %s105 = sphi 0, %s103
    %s106 = sphi 0, %s105
    %s120 = sphi 0, %s106
    %s124 = sphi 0, %s124
    %s126 = sphi 0, %s124
    %s127 = sphi 0, %s126
    %s141 = sphi 0, %s127
    %s145 = sphi 0, %s145
    %s147 = sphi 0, %s145
    %s148 = sphi 0, %s147
    %s162 = sphi 0, %s148
    %s166 = sphi 0, %s166
    %s168 = sphi 0, %s166
    %s169 = sphi 0, %s168
    %s183 = sphi 0, %s169
    %s187 = sphi 0, %s187
    %s189 = sphi 0, %s187
    %s190 = sphi 0, %s189
    %s204 = sphi 0, %s190
    %s208 = sphi 0, %s208
    %s210 = sphi 0, %s208
    %s211 = sphi 0, %s210
    %s225 = sphi 0, %s211
    %s229 = sphi 0, %s229
    %s231 = sphi 0, %s229
    %s232 = sphi 0, %s231
    %s246 = sphi 0, %s232
    %s250 = sphi 0, %s250
    %s252 = sphi 0, %s250
    %s253 = sphi 0, %s252
    %s267 = sphi 0, %s253
    %s271 = sphi 0, %s271
    %s273 = sphi 0, %s271
    %s274 = sphi 0, %s273
    %s288 = sphi 0, %s274
    %s292 = sphi 0, %s292
    %s294 = sphi 0, %s292
    %s295 = sphi 0, %s294
    %s309 = sphi 0, %s295
    %s313 = sphi 0, %s313
    %s315 = sphi 0, %s313
    %s316 = sphi 0, %s315
    %s330 = sphi 0, %s316
    %s334 = sphi 0, %s334
    %s336 = sphi 0, %s334
    %s337 = sphi 0, %s336
    %s351 = sphi 0, %s337
    %s355 = sphi 0, %s355
    %s357 = sphi 0, %s355
    %s358 = sphi 0, %s357
    %s372 = sphi 0, %s358
    %s378 = sphi 0, %s380
    %s381 = sphi 0, %s378
    %s382 = sphi 0, %s381
    %s398 = sphi 0, %s382
  $region4: #{transformer_encoder_layer.1} parent=0 // loop_header_branch
    %25 = sbr.rel (%p23) target = $region8
  $region5: #{transformer_encoder_layer.1} parent=0 // loop_body
    %s27 = ssub.s32 %s22, 1
    %s28 = ssub.s32 %s22, 2
    %s29 = sadd.s32 %s22, 1
    %s30 = ssub.s32 %s22, %s29
    %p31 = scmp.eq.s32.totalorder %s30, 0
    %s33 = sadd.s32 %s32, 1
    %s34 = scalar_select %p31, %s32, %s33
    %p37 = pneg %p31
    %p38 = scmp.eq.s32.totalorder %s22, 1
    %p39 = por %p37, %p38
    %p40 = scmp.ne.s32.totalorder %s32, %s35
    %p41 = scmp.eq.s32.totalorder %s22, 0
    %p42 = por %p40, %p41
    %p43 = scmp.ne.s32.totalorder %s32, %s35
    %p44 = scmp.eq.s32.totalorder %s27, 1
    %p45 = por %p43, %p44
    %p46 = scmp.ne.s32.totalorder %s35, %s36
    %p47 = scmp.eq.s32.totalorder %s27, 0
    %p48 = por %p46, %p47
    %p49 = scmp.ne.s32.totalorder %s35, %s36
    %p50 = scmp.eq.s32.totalorder %s28, 1
    %p51 = por %p49, %p50
    %p53 = scmp.ne.s32.totalorder %s36, %s52
    %p54 = scmp.eq.s32.totalorder %s28, 0
    %p55 = por %p53, %p54
    %s56 = ssub.s32 %s22, %s29
    %p57 = scmp.eq.s32.totalorder %s56, 0
    %s59 = sadd.s32 %s58, 1
    %s60 = scalar_select %p57, %s58, %s59
    %p63 = pneg %p57
    %p64 = scmp.eq.s32.totalorder %s22, 1
    %p65 = por %p63, %p64
    %p66 = scmp.ne.s32.totalorder %s58, %s61
    %p67 = scmp.eq.s32.totalorder %s22, 0
    %p68 = por %p66, %p67
    %p69 = scmp.ne.s32.totalorder %s58, %s61
    %p70 = scmp.eq.s32.totalorder %s27, 1
    %p71 = por %p69, %p70
    %p72 = scmp.ne.s32.totalorder %s61, %s62
    %p73 = scmp.eq.s32.totalorder %s27, 0
    %p74 = por %p72, %p73
    %p75 = scmp.ne.s32.totalorder %s61, %s62
    %p76 = scmp.eq.s32.totalorder %s28, 1
    %p77 = por %p75, %p76
    %p79 = scmp.ne.s32.totalorder %s62, %s78
    %p80 = scmp.eq.s32.totalorder %s28, 0
    %p81 = por %p79, %p80
    %s83 = sadd.s32 %s82, 1
    %p86 = scmp.eq.s32.totalorder %s22, 1
    %p87 = scmp.ne.s32.totalorder %s82, %s84
    %p88 = scmp.eq.s32.totalorder %s22, 0
    %p89 = por %p87, %p88
    %p90 = scmp.ne.s32.totalorder %s82, %s84
    %p91 = scmp.eq.s32.totalorder %s27, 1
    %p92 = por %p90, %p91
    %p93 = scmp.ne.s32.totalorder %s84, %s85
    %p94 = scmp.eq.s32.totalorder %s27, 0
    %p95 = por %p93, %p94
    %p96 = scmp.ne.s32.totalorder %s84, %s85
    %p97 = scmp.eq.s32.totalorder %s28, 1
    %p98 = por %p96, %p97
    %p100 = scmp.ne.s32.totalorder %s85, %s99
    %p101 = scmp.eq.s32.totalorder %s28, 0
    %p102 = por %p100, %p101
    %s104 = sadd.s32 %s103, 1
    %p107 = scmp.eq.s32.totalorder %s22, 1
    %p108 = scmp.ne.s32.totalorder %s103, %s105
    %p109 = scmp.eq.s32.totalorder %s22, 0
    %p110 = por %p108, %p109
    %p111 = scmp.ne.s32.totalorder %s103, %s105
    %p112 = scmp.eq.s32.totalorder %s27, 1
    %p113 = por %p111, %p112
    %p114 = scmp.ne.s32.totalorder %s105, %s106
    %p115 = scmp.eq.s32.totalorder %s27, 0
    %p116 = por %p114, %p115
    %p117 = scmp.ne.s32.totalorder %s105, %s106
    %p118 = scmp.eq.s32.totalorder %s28, 1
    %p119 = por %p117, %p118
    %p121 = scmp.ne.s32.totalorder %s106, %s120
    %p122 = scmp.eq.s32.totalorder %s28, 0
    %p123 = por %p121, %p122
    %s125 = sadd.s32 %s124, 1
    %p128 = scmp.eq.s32.totalorder %s22, 1
    %p129 = scmp.ne.s32.totalorder %s124, %s126
    %p130 = scmp.eq.s32.totalorder %s22, 0
    %p131 = por %p129, %p130
    %p132 = scmp.ne.s32.totalorder %s124, %s126
    %p133 = scmp.eq.s32.totalorder %s27, 1
    %p134 = por %p132, %p133
    %p135 = scmp.ne.s32.totalorder %s126, %s127
    %p136 = scmp.eq.s32.totalorder %s27, 0
    %p137 = por %p135, %p136
    %p138 = scmp.ne.s32.totalorder %s126, %s127
    %p139 = scmp.eq.s32.totalorder %s28, 1
    %p140 = por %p138, %p139
    %p142 = scmp.ne.s32.totalorder %s127, %s141
    %p143 = scmp.eq.s32.totalorder %s28, 0
    %p144 = por %p142, %p143
    %s146 = sadd.s32 %s145, 1
    %p149 = scmp.eq.s32.totalorder %s22, 1
    %p150 = scmp.ne.s32.totalorder %s145, %s147
    %p151 = scmp.eq.s32.totalorder %s22, 0
    %p152 = por %p150, %p151
    %p153 = scmp.ne.s32.totalorder %s145, %s147
    %p154 = scmp.eq.s32.totalorder %s27, 1
    %p155 = por %p153, %p154
    %p156 = scmp.ne.s32.totalorder %s147, %s148
    %p157 = scmp.eq.s32.totalorder %s27, 0
    %p158 = por %p156, %p157
    %p159 = scmp.ne.s32.totalorder %s147, %s148
    %p160 = scmp.eq.s32.totalorder %s28, 1
    %p161 = por %p159, %p160
    %p163 = scmp.ne.s32.totalorder %s148, %s162
    %p164 = scmp.eq.s32.totalorder %s28, 0
    %p165 = por %p163, %p164
    %s167 = sadd.s32 %s166, 1
    %p170 = scmp.eq.s32.totalorder %s22, 1
    %p171 = scmp.ne.s32.totalorder %s166, %s168
    %p172 = scmp.eq.s32.totalorder %s22, 0
    %p173 = por %p171, %p172
    %p174 = scmp.ne.s32.totalorder %s166, %s168
    %p175 = scmp.eq.s32.totalorder %s27, 1
    %p176 = por %p174, %p175
    %p177 = scmp.ne.s32.totalorder %s168, %s169
    %p178 = scmp.eq.s32.totalorder %s27, 0
    %p179 = por %p177, %p178
    %p180 = scmp.ne.s32.totalorder %s168, %s169
    %p181 = scmp.eq.s32.totalorder %s28, 1
    %p182 = por %p180, %p181
    %p184 = scmp.ne.s32.totalorder %s169, %s183
    %p185 = scmp.eq.s32.totalorder %s28, 0
    %p186 = por %p184, %p185
    %s188 = sadd.s32 %s187, 1
    %p191 = scmp.eq.s32.totalorder %s22, 1
    %p192 = scmp.ne.s32.totalorder %s187, %s189
    %p193 = scmp.eq.s32.totalorder %s22, 0
    %p194 = por %p192, %p193
    %p195 = scmp.ne.s32.totalorder %s187, %s189
    %p196 = scmp.eq.s32.totalorder %s27, 1
    %p197 = por %p195, %p196
    %p198 = scmp.ne.s32.totalorder %s189, %s190
    %p199 = scmp.eq.s32.totalorder %s27, 0
    %p200 = por %p198, %p199
    %p201 = scmp.ne.s32.totalorder %s189, %s190
    %p202 = scmp.eq.s32.totalorder %s28, 1
    %p203 = por %p201, %p202
    %p205 = scmp.ne.s32.totalorder %s190, %s204
    %p206 = scmp.eq.s32.totalorder %s28, 0
    %p207 = por %p205, %p206
    %s209 = sadd.s32 %s208, 1
    %p212 = scmp.eq.s32.totalorder %s22, 1
    %p213 = scmp.ne.s32.totalorder %s208, %s210
    %p214 = scmp.eq.s32.totalorder %s22, 0
    %p215 = por %p213, %p214
    %p216 = scmp.ne.s32.totalorder %s208, %s210
    %p217 = scmp.eq.s32.totalorder %s27, 1
    %p218 = por %p216, %p217
    %p219 = scmp.ne.s32.totalorder %s210, %s211
    %p220 = scmp.eq.s32.totalorder %s27, 0
    %p221 = por %p219, %p220
    %p222 = scmp.ne.s32.totalorder %s210, %s211
    %p223 = scmp.eq.s32.totalorder %s28, 1
    %p224 = por %p222, %p223
    %p226 = scmp.ne.s32.totalorder %s211, %s225
    %p227 = scmp.eq.s32.totalorder %s28, 0
    %p228 = por %p226, %p227
    %s230 = sadd.s32 %s229, 1
    %p233 = scmp.eq.s32.totalorder %s22, 1
    %p234 = scmp.ne.s32.totalorder %s229, %s231
    %p235 = scmp.eq.s32.totalorder %s22, 0
    %p236 = por %p234, %p235
    %p237 = scmp.ne.s32.totalorder %s229, %s231
    %p238 = scmp.eq.s32.totalorder %s27, 1
    %p239 = por %p237, %p238
    %p240 = scmp.ne.s32.totalorder %s231, %s232
    %p241 = scmp.eq.s32.totalorder %s27, 0
    %p242 = por %p240, %p241
    %p243 = scmp.ne.s32.totalorder %s231, %s232
    %p244 = scmp.eq.s32.totalorder %s28, 1
    %p245 = por %p243, %p244
    %p247 = scmp.ne.s32.totalorder %s232, %s246
    %p248 = scmp.eq.s32.totalorder %s28, 0
    %p249 = por %p247, %p248
    %s251 = sadd.s32 %s250, 1
    %p254 = scmp.eq.s32.totalorder %s22, 1
    %p255 = scmp.ne.s32.totalorder %s250, %s252
    %p256 = scmp.eq.s32.totalorder %s22, 0
    %p257 = por %p255, %p256
    %p258 = scmp.ne.s32.totalorder %s250, %s252
    %p259 = scmp.eq.s32.totalorder %s27, 1
    %p260 = por %p258, %p259
    %p261 = scmp.ne.s32.totalorder %s252, %s253
    %p262 = scmp.eq.s32.totalorder %s27, 0
    %p263 = por %p261, %p262
    %p264 = scmp.ne.s32.totalorder %s252, %s253
    %p265 = scmp.eq.s32.totalorder %s28, 1
    %p266 = por %p264, %p265
    %p268 = scmp.ne.s32.totalorder %s253, %s267
    %p269 = scmp.eq.s32.totalorder %s28, 0
    %p270 = por %p268, %p269
    %s272 = sadd.s32 %s271, 1
    %p275 = scmp.eq.s32.totalorder %s22, 1
    %p276 = scmp.ne.s32.totalorder %s271, %s273
    %p277 = scmp.eq.s32.totalorder %s22, 0
    %p278 = por %p276, %p277
    %p279 = scmp.ne.s32.totalorder %s271, %s273
    %p280 = scmp.eq.s32.totalorder %s27, 1
    %p281 = por %p279, %p280
    %p282 = scmp.ne.s32.totalorder %s273, %s274
    %p283 = scmp.eq.s32.totalorder %s27, 0
    %p284 = por %p282, %p283
    %p285 = scmp.ne.s32.totalorder %s273, %s274
    %p286 = scmp.eq.s32.totalorder %s28, 1
    %p287 = por %p285, %p286
    %p289 = scmp.ne.s32.totalorder %s274, %s288
    %p290 = scmp.eq.s32.totalorder %s28, 0
    %p291 = por %p289, %p290
    %s293 = sadd.s32 %s292, 1
    %p296 = scmp.eq.s32.totalorder %s22, 1
    %p297 = scmp.ne.s32.totalorder %s292, %s294
    %p298 = scmp.eq.s32.totalorder %s22, 0
    %p299 = por %p297, %p298
    %p300 = scmp.ne.s32.totalorder %s292, %s294
    %p301 = scmp.eq.s32.totalorder %s27, 1
    %p302 = por %p300, %p301
    %p303 = scmp.ne.s32.totalorder %s294, %s295
    %p304 = scmp.eq.s32.totalorder %s27, 0
    %p305 = por %p303, %p304
    %p306 = scmp.ne.s32.totalorder %s294, %s295
    %p307 = scmp.eq.s32.totalorder %s28, 1
    %p308 = por %p306, %p307
    %p310 = scmp.ne.s32.totalorder %s295, %s309
    %p311 = scmp.eq.s32.totalorder %s28, 0
    %p312 = por %p310, %p311
    %s314 = sadd.s32 %s313, 1
    %p317 = scmp.eq.s32.totalorder %s22, 1
    %p318 = scmp.ne.s32.totalorder %s313, %s315
    %p319 = scmp.eq.s32.totalorder %s22, 0
    %p320 = por %p318, %p319
    %p321 = scmp.ne.s32.totalorder %s313, %s315
    %p322 = scmp.eq.s32.totalorder %s27, 1
    %p323 = por %p321, %p322
    %p324 = scmp.ne.s32.totalorder %s315, %s316
    %p325 = scmp.eq.s32.totalorder %s27, 0
    %p326 = por %p324, %p325
    %p327 = scmp.ne.s32.totalorder %s315, %s316
    %p328 = scmp.eq.s32.totalorder %s28, 1
    %p329 = por %p327, %p328
    %p331 = scmp.ne.s32.totalorder %s316, %s330
    %p332 = scmp.eq.s32.totalorder %s28, 0
    %p333 = por %p331, %p332
    %s335 = sadd.s32 %s334, 1
    %p338 = scmp.eq.s32.totalorder %s22, 1
    %p339 = scmp.ne.s32.totalorder %s334, %s336
    %p340 = scmp.eq.s32.totalorder %s22, 0
    %p341 = por %p339, %p340
    %p342 = scmp.ne.s32.totalorder %s334, %s336
    %p343 = scmp.eq.s32.totalorder %s27, 1
    %p344 = por %p342, %p343
    %p345 = scmp.ne.s32.totalorder %s336, %s337
    %p346 = scmp.eq.s32.totalorder %s27, 0
    %p347 = por %p345, %p346
    %p348 = scmp.ne.s32.totalorder %s336, %s337
    %p349 = scmp.eq.s32.totalorder %s28, 1
    %p350 = por %p348, %p349
    %p352 = scmp.ne.s32.totalorder %s337, %s351
    %p353 = scmp.eq.s32.totalorder %s28, 0
    %p354 = por %p352, %p353
    %s356 = sadd.s32 %s355, 1
    %p359 = scmp.eq.s32.totalorder %s22, 1
    %p360 = scmp.ne.s32.totalorder %s355, %s357
    %p361 = scmp.eq.s32.totalorder %s22, 0
    %p362 = por %p360, %p361
    %p363 = scmp.ne.s32.totalorder %s355, %s357
    %p364 = scmp.eq.s32.totalorder %s27, 1
    %p365 = por %p363, %p364
    %p366 = scmp.ne.s32.totalorder %s357, %s358
    %p367 = scmp.eq.s32.totalorder %s27, 0
    %p368 = por %p366, %p367
    %p369 = scmp.ne.s32.totalorder %s357, %s358
    %p370 = scmp.eq.s32.totalorder %s28, 1
    %p371 = por %p369, %p370
    %p373 = scmp.ne.s32.totalorder %s358, %s372
    %p374 = scmp.eq.s32.totalorder %s28, 0
    %p375 = por %p373, %p374
    %s376 = ssub.s32 %s22, %s29
    %p377 = scmp.eq.s32.totalorder %s376, 0
    %s379 = sadd.s32 %s378, 1
    %s380 = scalar_select %p377, %s378, %s379
    %p383 = pneg %p377
    %p384 = scmp.eq.s32.totalorder %s22, 1
    %p385 = por %p383, %p384
    %p386 = scmp.ne.s32.totalorder %s378, %s381
    %p387 = scmp.eq.s32.totalorder %s22, 0
    %p388 = por %p386, %p387
    %p389 = scmp.ne.s32.totalorder %s378, %s381
    %p390 = scmp.eq.s32.totalorder %s27, 1
    %p391 = por %p389, %p390
    %p392 = scmp.ne.s32.totalorder %s381, %s382
    %p393 = scmp.eq.s32.totalorder %s27, 0
    %p394 = por %p392, %p393
    %p395 = scmp.ne.s32.totalorder %s381, %s382
    %p396 = scmp.eq.s32.totalorder %s28, 1
    %p397 = por %p395, %p396
    %p399 = scmp.ne.s32.totalorder %s382, %s398
    %p400 = scmp.eq.s32.totalorder %s28, 0
    %p401 = por %p399, %p400
    %p402 = scmp.le.s32.totalorder 1, %s22
    %p403 = scmp.lt.s32.totalorder %s22, 3
    %p404 = pnand %p402, %p403
    %p405 = pneg %p404
    // Predicated region
    $region9: #{transformer_encoder_layer.1} parent=5 // pred_check
      _
    $region10: #{transformer_encoder_layer.1} parent=5 // pred_check_branch
      %407 = sbr.rel (%p404) target = $region12
    $region11: #{transformer_encoder_layer.1} parent=5 // pred_region
      %s408 = ssub.s32 %s22, 1
      // Predicated region
      $region13: #{transformer_encoder_layer.1} parent=11 // pred_check
        %p409 = pneg %p95
      $region14: #{transformer_encoder_layer.1} parent=11 // pred_check_branch
        %411 = sbr.rel (%p409) target = $region16
      $region15: #{transformer_encoder_layer.1} parent=11 // pred_region
        _
      $region16: #{transformer_encoder_layer.1} parent=11 // pred_fallthru
        _
      // Predicated region
      $region17: #{transformer_encoder_layer.1} parent=11 // pred_check
        %p412 = pneg %p116
      $region18: #{transformer_encoder_layer.1} parent=11 // pred_check_branch
        %414 = sbr.rel (%p412) target = $region20
      $region19: #{transformer_encoder_layer.1} parent=11 // pred_region
        _
      $region20: #{transformer_encoder_layer.1} parent=11 // pred_fallthru
        _
      // Predicated region
      $region21: #{transformer_encoder_layer.1} parent=11 // pred_check
        %p415 = pneg %p137
      $region22: #{transformer_encoder_layer.1} parent=11 // pred_check_branch
        %417 = sbr.rel (%p415) target = $region24
      $region23: #{transformer_encoder_layer.1} parent=11 // pred_region
        _
      $region24: #{transformer_encoder_layer.1} parent=11 // pred_fallthru
        _
      // Predicated region
      $region25: #{transformer_encoder_layer.1} parent=11 // pred_check
        %p418 = pneg %p158
      $region26: #{transformer_encoder_layer.1} parent=11 // pred_check_branch
        %420 = sbr.rel (%p418) target = $region28
      $region27: #{transformer_encoder_layer.1} parent=11 // pred_region
        _
      $region28: #{transformer_encoder_layer.1} parent=11 // pred_fallthru
        _
      // Predicated region
      $region29: #{transformer_encoder_layer.1} parent=11 // pred_check
        %p421 = pneg %p179
      $region30: #{transformer_encoder_layer.1} parent=11 // pred_check_branch
        %423 = sbr.rel (%p421) target = $region32
      $region31: #{transformer_encoder_layer.1} parent=11 // pred_region
        _
      $region32: #{transformer_encoder_layer.1} parent=11 // pred_fallthru
        _
      // Predicated region
      $region33: #{transformer_encoder_layer.1} parent=11 // pred_check
        %p424 = pneg %p200
      $region34: #{transformer_encoder_layer.1} parent=11 // pred_check_branch
        %426 = sbr.rel (%p424) target = $region36
      $region35: #{transformer_encoder_layer.1} parent=11 // pred_region
        _
      $region36: #{transformer_encoder_layer.1} parent=11 // pred_fallthru
        _
      // Predicated region
      $region37: #{transformer_encoder_layer.1} parent=11 // pred_check
        %p427 = pneg %p221
      $region38: #{transformer_encoder_layer.1} parent=11 // pred_check_branch
        %429 = sbr.rel (%p427) target = $region40
      $region39: #{transformer_encoder_layer.1} parent=11 // pred_region
        _
      $region40: #{transformer_encoder_layer.1} parent=11 // pred_fallthru
        _
      // Predicated region
      $region41: #{transformer_encoder_layer.1} parent=11 // pred_check
        %p430 = pneg %p242
      $region42: #{transformer_encoder_layer.1} parent=11 // pred_check_branch
        %432 = sbr.rel (%p430) target = $region44
      $region43: #{transformer_encoder_layer.1} parent=11 // pred_region
        _
      $region44: #{transformer_encoder_layer.1} parent=11 // pred_fallthru
        _
      // Predicated region
      $region45: #{transformer_encoder_layer.1} parent=11 // pred_check
        %p433 = pneg %p263
      $region46: #{transformer_encoder_layer.1} parent=11 // pred_check_branch
        %435 = sbr.rel (%p433) target = $region48
      $region47: #{transformer_encoder_layer.1} parent=11 // pred_region
        _
      $region48: #{transformer_encoder_layer.1} parent=11 // pred_fallthru
        _
      // Predicated region
      $region49: #{transformer_encoder_layer.1} parent=11 // pred_check
        %p436 = pneg %p284
      $region50: #{transformer_encoder_layer.1} parent=11 // pred_check_branch
        %438 = sbr.rel (%p436) target = $region52
      $region51: #{transformer_encoder_layer.1} parent=11 // pred_region
        _
      $region52: #{transformer_encoder_layer.1} parent=11 // pred_fallthru
        _
      // Predicated region
      $region53: #{transformer_encoder_layer.1} parent=11 // pred_check
        %p439 = pneg %p305
      $region54: #{transformer_encoder_layer.1} parent=11 // pred_check_branch
        %441 = sbr.rel (%p439) target = $region56
      $region55: #{transformer_encoder_layer.1} parent=11 // pred_region
        _
      $region56: #{transformer_encoder_layer.1} parent=11 // pred_fallthru
        _
      // Predicated region
      $region57: #{transformer_encoder_layer.1} parent=11 // pred_check
        %p442 = pneg %p326
      $region58: #{transformer_encoder_layer.1} parent=11 // pred_check_branch
        %444 = sbr.rel (%p442) target = $region60
      $region59: #{transformer_encoder_layer.1} parent=11 // pred_region
        _
      $region60: #{transformer_encoder_layer.1} parent=11 // pred_fallthru
        _
      // Predicated region
      $region61: #{transformer_encoder_layer.1} parent=11 // pred_check
        %p445 = pneg %p347
      $region62: #{transformer_encoder_layer.1} parent=11 // pred_check_branch
        %447 = sbr.rel (%p445) target = $region64
      $region63: #{transformer_encoder_layer.1} parent=11 // pred_region
        _
      $region64: #{transformer_encoder_layer.1} parent=11 // pred_fallthru
        _
      // Predicated region
      $region65: #{transformer_encoder_layer.1} parent=11 // pred_check
        %p448 = pneg %p368
      $region66: #{transformer_encoder_layer.1} parent=11 // pred_check_branch
        %450 = sbr.rel (%p448) target = $region68
      $region67: #{transformer_encoder_layer.1} parent=11 // pred_region
        _
      $region68: #{transformer_encoder_layer.1} parent=11 // pred_fallthru
        _
    $region12: #{transformer_encoder_layer.1} parent=5 // pred_fallthru
      _
    %p451 = scmp.lt.s32.totalorder %s22, 2
    // Predicated region
    $region69: #{transformer_encoder_layer.1} parent=5 // pred_check
      %p452 = pneg %p451
    $region70: #{transformer_encoder_layer.1} parent=5 // pred_check_branch
      %454 = sbr.rel (%p452) target = $region72
    $region71: #{transformer_encoder_layer.1} parent=5 // pred_region
      // Predicated region
      $region73: #{transformer_encoder_layer.1} parent=71 // pred_check
        %p455 = pneg %p42
      $region74: #{transformer_encoder_layer.1} parent=71 // pred_check_branch
        %457 = sbr.rel (%p455) target = $region76
      $region75: #{transformer_encoder_layer.1} parent=71 // pred_region
        %p458 = scmp.lt.s32.totalorder %s22, 1
        %s459 = scalar_select %p458, %s22, 1
        %s460 = smul.addr %s459, 8
        %s461 = scalar_lea.vmem %s0, %s460
      $region76: #{transformer_encoder_layer.1} parent=71 // pred_fallthru
        _
      // Predicated region
      $region77: #{transformer_encoder_layer.1} parent=71 // pred_check
        %p462 = pneg %p68
      $region78: #{transformer_encoder_layer.1} parent=71 // pred_check_branch
        %464 = sbr.rel (%p462) target = $region80
      $region79: #{transformer_encoder_layer.1} parent=71 // pred_region
        %p465 = scmp.lt.s32.totalorder %s22, 1
        %s466 = scalar_select %p465, %s22, 1
        %s467 = smul.addr %s466, 8
        %s468 = scalar_lea.vmem %s1, %s467
      $region80: #{transformer_encoder_layer.1} parent=71 // pred_fallthru
        _
    $region72: #{transformer_encoder_layer.1} parent=5 // pred_fallthru
      _
    %p469 = scmp.le.s32.totalorder 1, %s22
    %p470 = scmp.lt.s32.totalorder %s22, 3
    %p471 = pnand %p469, %p470
    %p472 = pneg %p471
    // Predicated region
    $region81: #{transformer_encoder_layer.1} parent=5 // pred_check
      _
    $region82: #{transformer_encoder_layer.1} parent=5 // pred_check_branch
      %474 = sbr.rel (%p471) target = $region84
    $region83: #{transformer_encoder_layer.1} parent=5 // pred_region
      %s475 = ssub.s32 %s22, 1
      %p476 = scmp.lt.s32.totalorder %s27, 1
      %s477 = scalar_select %p476, %s27, 1
      %s478 = smul.addr %s477, 8
      %s479 = scalar_lea.vmem %s0, %s478
      %p480 = pneg %p48
      %p481 = pneg %p45
      %p482 = scmp.lt.s32.totalorder %s27, 1
      %s483 = scalar_select %p482, %s27, 1
      %s484 = smul.addr %s483, 8
      %s485 = scalar_lea.vmem %s1, %s484
      %p486 = pneg %p74
      %p487 = pneg %p71
      %p488 = pneg %p95
      %p489 = pneg %p92
      %p490 = pneg %p116
      %p491 = pneg %p113
      %p492 = pneg %p137
      %p493 = pneg %p134
      %p494 = pneg %p158
      %p495 = pneg %p155
      %p496 = pneg %p179
      %p497 = pneg %p176
      %p498 = pneg %p200
      %p499 = pneg %p197
      %p500 = pneg %p221
      %p501 = pneg %p218
      %p502 = pneg %p242
      %p503 = pneg %p239
      %p504 = pneg %p263
      %p505 = pneg %p260
      %p506 = pneg %p284
      %p507 = pneg %p281
      %p508 = pneg %p305
      %p509 = pneg %p302
      %p510 = pneg %p326
      %p511 = pneg %p323
      %p512 = pneg %p347
      %p513 = pneg %p344
      %p514 = pneg %p368
      %p515 = pneg %p365
      %p516 = pneg %p394
      %p517 = pneg %p391
      %p518 = scmp.lt.s32.totalorder %s27, 1
      %s519 = scalar_select %p518, %s27, 1
      %s520 = smul.addr %s519, 8
      %s521 = scalar_lea.vmem %s16, %s520
      %p522 = scmp.lt.s32.totalorder %s27, 1
      %s523 = scalar_select %p522, %s27, 1
      %s524 = smul.addr %s523, 8
      %s525 = scalar_lea.vmem %s0, %s524
      %p526 = scmp.lt.s32.totalorder %s27, 1
      %s527 = scalar_select %p526, %s27, 1
      %s528 = smul.addr %s527, 8
      %s529 = scalar_lea.vmem %s1, %s528
      %p530 = scmp.lt.s32.totalorder %s27, 1
      %s531 = scalar_select %p530, %s27, 1
      %s532 = smul.addr %s531, 8
      %s533 = scalar_lea.vmem %s16, %s532
      %v534 = vld [vmem:[%s525] sm:$0xff]
      %v535 = vld [vmem:[%s529] sm:$0xff]
      %v536 = vadd.f32 %v534, %v535
      %v537 = vld [vmem:[%s2] sm:$0xff]
      %v538 = vld [vmem:[%s2 + $0x8] sm:$0xff]
      %v539 = vld [vmem:[%s2 + $0x10] sm:$0xff]
      %v540 = vld [vmem:[%s2 + $0x18] sm:$0xff]
      %v541 = vld [vmem:[%s3] sm:$0x1]
      %v543 = vlaneseq
      %v544 = vshrl.u32 %v543, 7
      %v545 = vsub.s32 0, %v544
      %v546 = vrot.slane %v541, %v545
      %vm548 = vcmask 261120
      %v550 = vsel %vm548, %v536, 0
      %552 = vmatprep.subr.mxu0 0.0
      %553 = vmatpush1.msra.mxu0 0.0
      %554 = vmatprep.subr.mxu0 0.0
      %555 = vmatpush1.msra.mxu0 0.0
      %556 = vmatprep.subr.mxu0 0.0
      %557 = vmatpush1.msra.mxu0 0.0
      %558 = vmatprep.subr.mxu0 0.0
      %559 = vmatpush1.msra.mxu0 0.0
      %560 = vmatprep.subr.mxu0 0.0
      %561 = vmatpush1.msra.mxu0 0.0
      %562 = vmatprep.subr.mxu0 0.0
      %563 = vmatpush1.msra.mxu0 0.0
      %564 = vmatprep.subr.mxu0 0.0
      %565 = vmatpush1.msra.mxu0 0.0
      %566 = vmatprep.subr.mxu0 0.0
      %567 = vmatpush1.msra.mxu0 0.0
      %568 = vmatprep.subr.mxu0 0.0
      %569 = vmatpush1.msra.mxu0 0.0
      %570 = vmatprep.subr.mxu0 0.0
      %571 = vmatpush1.msra.mxu0 0.0
      %572 = vmatprep.subr.mxu0 0.0
      %573 = vmatpush1.msra.mxu0 0.0
      %574 = vmatprep.subr.mxu0 0.0
      %575 = vmatpush1.msra.mxu0 0.0
      %576 = vmatprep.subr.mxu0 0.0
      %577 = vmatpush1.msra.mxu0 %v540
      %578 = vmatprep.subr.mxu0 0.0
      %579 = vmatpush1.msra.mxu0 %v539
      %580 = vmatprep.subr.mxu0 0.0
      %581 = vmatpush1.msra.mxu0 %v538
      %582 = vmatprep.subr.mxu0 0.0
      %583 = vmatpush1.msra.mxu0 %v537
      %584 = vmatprep.subr.mxu0 0.0
      %585 = vmatpush2.msra.mxu0 0.0
      %586 = vmatprep.subr.mxu0 0.0
      %587 = vmatpush2.msra.mxu0 0.0
      %588 = vmatprep.subr.mxu0 0.0
      %589 = vmatpush2.msra.mxu0 0.0
      %590 = vmatprep.subr.mxu0 0.0
      %591 = vmatpush2.msra.mxu0 0.0
      %592 = vmatprep.subr.mxu0 0.0
      %593 = vmatpush2.msra.mxu0 0.0
      %594 = vmatprep.subr.mxu0 0.0
      %595 = vmatpush2.msra.mxu0 0.0
      %596 = vmatprep.subr.mxu0 0.0
      %597 = vmatpush2.msra.mxu0 0.0
      %598 = vmatprep.subr.mxu0 0.0
      %599 = vmatpush2.msra.mxu0 0.0
      %600 = vmatprep.subr.mxu0 0.0
      %601 = vmatpush2.msra.mxu0 0.0
      %602 = vmatprep.subr.mxu0 0.0
      %603 = vmatpush2.msra.mxu0 0.0
      %604 = vmatprep.subr.mxu0 0.0
      %605 = vmatpush2.msra.mxu0 0.0
      %606 = vmatprep.subr.mxu0 0.0
      %607 = vmatpush2.msra.mxu0 0.0
      %608 = vmatprep.subr.mxu0 0.0
      %609 = vmatpush2.msra.mxu0 0.0
      %610 = vmatprep.subr.mxu0 0.0
      %611 = vmatpush2.msra.mxu0 0.0
      %612 = vmatprep.subr.mxu0 0.0
      %613 = vmatpush2.msra.mxu0 0.0
      %614 = vmatprep.subr.mxu0 0.0
      %615 = vmatpush2.msra.mxu0 0.0
      %616 = vmatprep.mubr.f32.mxu0 0.0
      %617 = vmatmul.mubr.f32.gmra.mxu0 %v550
      %v618 = vpop.f32.mrf.mxu0
      %v619 = vadd.f32 %v546, %v618
      %v620 = vpop.f32.mrf.mxu0
      %621 = vdwg.mxu0
      %v622 = vld [vmem:[%s4] sm:$0xff]
      %v623 = vld [vmem:[%s4 + $0x8] sm:$0xff]
      %v624 = vld [vmem:[%s4 + $0x10] sm:$0xff]
      %v625 = vld [vmem:[%s4 + $0x18] sm:$0xff]
      %v626 = vld [vmem:[%s5] sm:$0x1]
      %v628 = vlaneseq
      %v629 = vshrl.u32 %v628, 7
      %v630 = vsub.s32 0, %v629
      %v631 = vrot.slane %v626, %v630
      %v634 = vsel %vm548, %v534, 0
      %636 = vmatprep.subr.mxu0 0.0
      %637 = vmatpush1.msra.mxu0 0.0
      %638 = vmatprep.subr.mxu0 0.0
      %639 = vmatpush1.msra.mxu0 0.0
      %640 = vmatprep.subr.mxu0 0.0
      %641 = vmatpush1.msra.mxu0 0.0
      %642 = vmatprep.subr.mxu0 0.0
      %643 = vmatpush1.msra.mxu0 0.0
      %644 = vmatprep.subr.mxu0 0.0
      %645 = vmatpush1.msra.mxu0 0.0
      %646 = vmatprep.subr.mxu0 0.0
      %647 = vmatpush1.msra.mxu0 0.0
      %648 = vmatprep.subr.mxu0 0.0
      %649 = vmatpush1.msra.mxu0 0.0
      %650 = vmatprep.subr.mxu0 0.0
      %651 = vmatpush1.msra.mxu0 0.0
      %652 = vmatprep.subr.mxu0 0.0
      %653 = vmatpush1.msra.mxu0 0.0
      %654 = vmatprep.subr.mxu0 0.0
      %655 = vmatpush1.msra.mxu0 0.0
      %656 = vmatprep.subr.mxu0 0.0
      %657 = vmatpush1.msra.mxu0 0.0
      %658 = vmatprep.subr.mxu0 0.0
      %659 = vmatpush1.msra.mxu0 0.0
      %660 = vmatprep.subr.mxu0 0.0
      %661 = vmatpush1.msra.mxu0 %v625
      %662 = vmatprep.subr.mxu0 0.0
      %663 = vmatpush1.msra.mxu0 %v624
      %664 = vmatprep.subr.mxu0 0.0
      %665 = vmatpush1.msra.mxu0 %v623
      %666 = vmatprep.subr.mxu0 0.0
      %667 = vmatpush1.msra.mxu0 %v622
      %668 = vmatprep.subr.mxu0 0.0
      %669 = vmatpush2.msra.mxu0 0.0
      %670 = vmatprep.subr.mxu0 0.0
      %671 = vmatpush2.msra.mxu0 0.0
      %672 = vmatprep.subr.mxu0 0.0
      %673 = vmatpush2.msra.mxu0 0.0
      %674 = vmatprep.subr.mxu0 0.0
      %675 = vmatpush2.msra.mxu0 0.0
      %676 = vmatprep.subr.mxu0 0.0
      %677 = vmatpush2.msra.mxu0 0.0
      %678 = vmatprep.subr.mxu0 0.0
      %679 = vmatpush2.msra.mxu0 0.0
      %680 = vmatprep.subr.mxu0 0.0
      %681 = vmatpush2.msra.mxu0 0.0
      %682 = vmatprep.subr.mxu0 0.0
      %683 = vmatpush2.msra.mxu0 0.0
      %684 = vmatprep.subr.mxu0 0.0
      %685 = vmatpush2.msra.mxu0 0.0
      %686 = vmatprep.subr.mxu0 0.0
      %687 = vmatpush2.msra.mxu0 0.0
      %688 = vmatprep.subr.mxu0 0.0
      %689 = vmatpush2.msra.mxu0 0.0
      %690 = vmatprep.subr.mxu0 0.0
      %691 = vmatpush2.msra.mxu0 0.0
      %692 = vmatprep.subr.mxu0 0.0
      %693 = vmatpush2.msra.mxu0 0.0
      %694 = vmatprep.subr.mxu0 0.0
      %695 = vmatpush2.msra.mxu0 0.0
      %696 = vmatprep.subr.mxu0 0.0
      %697 = vmatpush2.msra.mxu0 0.0
      %698 = vmatprep.subr.mxu0 0.0
      %699 = vmatpush2.msra.mxu0 0.0
      %700 = vmatprep.mubr.f32.mxu0 0.0
      %701 = vmatmul.mubr.f32.gmra.mxu0 %v634
      %v702 = vpop.f32.mrf.mxu0
      %v703 = vadd.f32 %v631, %v702
      %v704 = vpop.f32.mrf.mxu0
      %705 = vdwg.mxu0
      %707 = vrot.lane.b32.xlu0 %v619, 120
      %v708 = vpop.permute.xlu0 %707
      %709 = vrot.lane.b32.xlu0 %v619, 112
      %v710 = vpop.permute.xlu0 %709
      %711 = vrot.lane.b32.xlu0 %v619, 104
      %v712 = vpop.permute.xlu0 %711
      %714 = vrot.lane.b32.xlu0 %v703, 120
      %v715 = vpop.permute.xlu0 %714
      %717 = vrot.lane.b32.xlu0 %v703, 112
      %v718 = vpop.permute.xlu0 %717
      %720 = vrot.lane.b32.xlu0 %v703, 104
      %v721 = vpop.permute.xlu0 %720
      %723 = vrot.lane.b32.xlu0 %v619, 96
      %v724 = vpop.permute.xlu0 %723
      %725 = vrot.lane.b32.xlu0 %v708, 96
      %v726 = vpop.permute.xlu0 %725
      %727 = vrot.lane.b32.xlu0 %v710, 96
      %v728 = vpop.permute.xlu0 %727
      %729 = vrot.lane.b32.xlu0 %v712, 96
      %v730 = vpop.permute.xlu0 %729
      %735 = vxpose.xlu0.b32.start [1/16] %v724, 128
      %736 = vxpose.xlu0.b32.cont [2/16] 0.0, 128
      %737 = vxpose.xlu0.b32.cont [3/16] 0.0, 128
      %738 = vxpose.xlu0.b32.cont [4/16] 0.0, 128
      %739 = vxpose.xlu0.b32.cont [5/16] 0.0, 128
      %740 = vxpose.xlu0.b32.cont [6/16] 0.0, 128
      %741 = vxpose.xlu0.b32.cont [7/16] 0.0, 128
      %742 = vxpose.xlu0.b32.cont [8/16] 0.0, 128
      %743 = vxpose.xlu0.b32.cont [9/16] 0.0, 128
      %744 = vxpose.xlu0.b32.cont [10/16] 0.0, 128
      %745 = vxpose.xlu0.b32.cont [11/16] 0.0, 128
      %746 = vxpose.xlu0.b32.cont [12/16] 0.0, 128
      %747 = vxpose.xlu0.b32.cont [13/16] 0.0, 128
      %748 = vxpose.xlu0.b32.cont [14/16] 0.0, 128
      %749 = vxpose.xlu0.b32.cont [15/16] 0.0, 128
      %750 = vxpose.xlu0.b32.end [16/16] 0.0, 128
      %v751 = vpop.trf.xlu0
      %v752 = vpop.trf.xlu0
      %v753 = vpop.trf.xlu0
      %v754 = vpop.trf.xlu0
      %v755 = vpop.trf.xlu0
      %v756 = vpop.trf.xlu0
      %v757 = vpop.trf.xlu0
      %v758 = vpop.trf.xlu0
      %v759 = vpop.trf.xlu0
      %v760 = vpop.trf.xlu0
      %v761 = vpop.trf.xlu0
      %v762 = vpop.trf.xlu0
      %v763 = vpop.trf.xlu0
      %v764 = vpop.trf.xlu0
      %v765 = vpop.trf.xlu0
      %v766 = vpop.trf.xlu0
      %767 = vxpose.xlu0.b32.start [1/16] %v726, 128
      %768 = vxpose.xlu0.b32.cont [2/16] 0.0, 128
      %769 = vxpose.xlu0.b32.cont [3/16] 0.0, 128
      %770 = vxpose.xlu0.b32.cont [4/16] 0.0, 128
      %771 = vxpose.xlu0.b32.cont [5/16] 0.0, 128
      %772 = vxpose.xlu0.b32.cont [6/16] 0.0, 128
      %773 = vxpose.xlu0.b32.cont [7/16] 0.0, 128
      %774 = vxpose.xlu0.b32.cont [8/16] 0.0, 128
      %775 = vxpose.xlu0.b32.cont [9/16] 0.0, 128
      %776 = vxpose.xlu0.b32.cont [10/16] 0.0, 128
      %777 = vxpose.xlu0.b32.cont [11/16] 0.0, 128
      %778 = vxpose.xlu0.b32.cont [12/16] 0.0, 128
      %779 = vxpose.xlu0.b32.cont [13/16] 0.0, 128
      %780 = vxpose.xlu0.b32.cont [14/16] 0.0, 128
      %781 = vxpose.xlu0.b32.cont [15/16] 0.0, 128
      %782 = vxpose.xlu0.b32.end [16/16] 0.0, 128
      %v783 = vpop.trf.xlu0
      %v784 = vpop.trf.xlu0
      %v785 = vpop.trf.xlu0
      %v786 = vpop.trf.xlu0
      %v787 = vpop.trf.xlu0
      %v788 = vpop.trf.xlu0
      %v789 = vpop.trf.xlu0
      %v790 = vpop.trf.xlu0
      %v791 = vpop.trf.xlu0
      %v792 = vpop.trf.xlu0
      %v793 = vpop.trf.xlu0
      %v794 = vpop.trf.xlu0
      %v795 = vpop.trf.xlu0
      %v796 = vpop.trf.xlu0
      %v797 = vpop.trf.xlu0
      %v798 = vpop.trf.xlu0
      %799 = vxpose.xlu0.b32.start [1/16] %v728, 128
      %800 = vxpose.xlu0.b32.cont [2/16] 0.0, 128
      %801 = vxpose.xlu0.b32.cont [3/16] 0.0, 128
      %802 = vxpose.xlu0.b32.cont [4/16] 0.0, 128
      %803 = vxpose.xlu0.b32.cont [5/16] 0.0, 128
      %804 = vxpose.xlu0.b32.cont [6/16] 0.0, 128
      %805 = vxpose.xlu0.b32.cont [7/16] 0.0, 128
      %806 = vxpose.xlu0.b32.cont [8/16] 0.0, 128
      %807 = vxpose.xlu0.b32.cont [9/16] 0.0, 128
      %808 = vxpose.xlu0.b32.cont [10/16] 0.0, 128
      %809 = vxpose.xlu0.b32.cont [11/16] 0.0, 128
      %810 = vxpose.xlu0.b32.cont [12/16] 0.0, 128
      %811 = vxpose.xlu0.b32.cont [13/16] 0.0, 128
      %812 = vxpose.xlu0.b32.cont [14/16] 0.0, 128
      %813 = vxpose.xlu0.b32.cont [15/16] 0.0, 128
      %814 = vxpose.xlu0.b32.end [16/16] 0.0, 128
      %v815 = vpop.trf.xlu0
      %v816 = vpop.trf.xlu0
      %v817 = vpop.trf.xlu0
      %v818 = vpop.trf.xlu0
      %v819 = vpop.trf.xlu0
      %v820 = vpop.trf.xlu0
      %v821 = vpop.trf.xlu0
      %v822 = vpop.trf.xlu0
      %v823 = vpop.trf.xlu0
      %v824 = vpop.trf.xlu0
      %v825 = vpop.trf.xlu0
      %v826 = vpop.trf.xlu0
      %v827 = vpop.trf.xlu0
      %v828 = vpop.trf.xlu0
      %v829 = vpop.trf.xlu0
      %v830 = vpop.trf.xlu0
      %831 = vxpose.xlu0.b32.start [1/16] %v730, 128
      %832 = vxpose.xlu0.b32.cont [2/16] 0.0, 128
      %833 = vxpose.xlu0.b32.cont [3/16] 0.0, 128
      %834 = vxpose.xlu0.b32.cont [4/16] 0.0, 128
      %835 = vxpose.xlu0.b32.cont [5/16] 0.0, 128
      %836 = vxpose.xlu0.b32.cont [6/16] 0.0, 128
      %837 = vxpose.xlu0.b32.cont [7/16] 0.0, 128
      %838 = vxpose.xlu0.b32.cont [8/16] 0.0, 128
      %839 = vxpose.xlu0.b32.cont [9/16] 0.0, 128
      %840 = vxpose.xlu0.b32.cont [10/16] 0.0, 128
      %841 = vxpose.xlu0.b32.cont [11/16] 0.0, 128
      %842 = vxpose.xlu0.b32.cont [12/16] 0.0, 128
      %843 = vxpose.xlu0.b32.cont [13/16] 0.0, 128
      %844 = vxpose.xlu0.b32.cont [14/16] 0.0, 128
      %845 = vxpose.xlu0.b32.cont [15/16] 0.0, 128
      %846 = vxpose.xlu0.b32.end [16/16] 0.0, 128
      %v847 = vpop.trf.xlu0
      %v848 = vpop.trf.xlu0
      %v849 = vpop.trf.xlu0
      %v850 = vpop.trf.xlu0
      %v851 = vpop.trf.xlu0
      %v852 = vpop.trf.xlu0
      %v853 = vpop.trf.xlu0
      %v854 = vpop.trf.xlu0
      %v855 = vpop.trf.xlu0
      %v856 = vpop.trf.xlu0
      %v857 = vpop.trf.xlu0
      %v858 = vpop.trf.xlu0
      %v859 = vpop.trf.xlu0
      %v860 = vpop.trf.xlu0
      %v861 = vpop.trf.xlu0
      %v862 = vpop.trf.xlu0
      %vm863 = vcmask 64512
      %v864 = vsel %vm863, %v619, 0
      %866 = vmatprep.subr.mxu0 0.0
      %867 = vmatpush1.msra.mxu0 0.0
      %868 = vmatprep.subr.mxu0 0.0
      %869 = vmatpush1.msra.mxu0 0.0
      %870 = vmatprep.subr.mxu0 0.0
      %871 = vmatpush1.msra.mxu0 0.0
      %872 = vmatprep.subr.mxu0 0.0
      %873 = vmatpush1.msra.mxu0 0.0
      %874 = vmatprep.subr.mxu0 0.0
      %875 = vmatpush1.msra.mxu0 0.0
      %876 = vmatprep.subr.mxu0 0.0
      %877 = vmatpush1.msra.mxu0 0.0
      %878 = vmatprep.subr.mxu0 0.0
      %879 = vmatpush1.msra.mxu0 0.0
      %880 = vmatprep.subr.mxu0 0.0
      %881 = vmatpush1.msra.mxu0 0.0
      %882 = vmatprep.subr.mxu0 0.0
      %883 = vmatpush1.msra.mxu0 0.0
      %884 = vmatprep.subr.mxu0 0.0
      %885 = vmatpush1.msra.mxu0 0.0
      %886 = vmatprep.subr.mxu0 0.0
      %887 = vmatpush1.msra.mxu0 0.0
      %888 = vmatprep.subr.mxu0 0.0
      %889 = vmatpush1.msra.mxu0 0.0
      %890 = vmatprep.subr.mxu0 0.0
      %891 = vmatpush1.msra.mxu0 0.0
      %892 = vmatprep.subr.mxu0 0.0
      %893 = vmatpush1.msra.mxu0 0.0
      %894 = vmatprep.subr.mxu0 0.0
      %895 = vmatpush1.msra.mxu0 0.0
      %896 = vmatprep.subr.mxu0 0.0
      %897 = vmatpush1.msra.mxu0 %v751
      %898 = vmatprep.subr.mxu0 0.0
      %899 = vmatpush2.msra.mxu0 0.0
      %900 = vmatprep.subr.mxu0 0.0
      %901 = vmatpush2.msra.mxu0 0.0
      %902 = vmatprep.subr.mxu0 0.0
      %903 = vmatpush2.msra.mxu0 0.0
      %904 = vmatprep.subr.mxu0 0.0
      %905 = vmatpush2.msra.mxu0 0.0
      %906 = vmatprep.subr.mxu0 0.0
      %907 = vmatpush2.msra.mxu0 0.0
      %908 = vmatprep.subr.mxu0 0.0
      %909 = vmatpush2.msra.mxu0 0.0
      %910 = vmatprep.subr.mxu0 0.0
      %911 = vmatpush2.msra.mxu0 0.0
      %912 = vmatprep.subr.mxu0 0.0
      %913 = vmatpush2.msra.mxu0 0.0
      %914 = vmatprep.subr.mxu0 0.0
      %915 = vmatpush2.msra.mxu0 0.0
      %916 = vmatprep.subr.mxu0 0.0
      %917 = vmatpush2.msra.mxu0 0.0
      %918 = vmatprep.subr.mxu0 0.0
      %919 = vmatpush2.msra.mxu0 0.0
      %920 = vmatprep.subr.mxu0 0.0
      %921 = vmatpush2.msra.mxu0 0.0
      %922 = vmatprep.subr.mxu0 0.0
      %923 = vmatpush2.msra.mxu0 0.0
      %924 = vmatprep.subr.mxu0 0.0
      %925 = vmatpush2.msra.mxu0 0.0
      %926 = vmatprep.subr.mxu0 0.0
      %927 = vmatpush2.msra.mxu0 0.0
      %928 = vmatprep.subr.mxu0 0.0
      %929 = vmatpush2.msra.mxu0 0.0
      %930 = vmatprep.mubr.f32.mxu0 0.0
      %931 = vmatmul.mubr.f32.gmra.mxu0 %v864
      %v932 = vpop.f32.mrf.mxu0
      %v933 = vadd.f32 0.0, %v932
      %v934 = vpop.f32.mrf.mxu0
      %935 = vdwg.mxu0
      %v936 = vsel %vm863, %v708, 0
      %938 = vmatprep.subr.mxu0 0.0
      %939 = vmatpush1.msra.mxu0 0.0
      %940 = vmatprep.subr.mxu0 0.0
      %941 = vmatpush1.msra.mxu0 0.0
      %942 = vmatprep.subr.mxu0 0.0
      %943 = vmatpush1.msra.mxu0 0.0
      %944 = vmatprep.subr.mxu0 0.0
      %945 = vmatpush1.msra.mxu0 0.0
      %946 = vmatprep.subr.mxu0 0.0
      %947 = vmatpush1.msra.mxu0 0.0
      %948 = vmatprep.subr.mxu0 0.0
      %949 = vmatpush1.msra.mxu0 0.0
      %950 = vmatprep.subr.mxu0 0.0
      %951 = vmatpush1.msra.mxu0 0.0
      %952 = vmatprep.subr.mxu0 0.0
      %953 = vmatpush1.msra.mxu0 0.0
      %954 = vmatprep.subr.mxu0 0.0
      %955 = vmatpush1.msra.mxu0 0.0
      %956 = vmatprep.subr.mxu0 0.0
      %957 = vmatpush1.msra.mxu0 0.0
      %958 = vmatprep.subr.mxu0 0.0
      %959 = vmatpush1.msra.mxu0 0.0
      %960 = vmatprep.subr.mxu0 0.0
      %961 = vmatpush1.msra.mxu0 0.0
      %962 = vmatprep.subr.mxu0 0.0
      %963 = vmatpush1.msra.mxu0 0.0
      %964 = vmatprep.subr.mxu0 0.0
      %965 = vmatpush1.msra.mxu0 0.0
      %966 = vmatprep.subr.mxu0 0.0
      %967 = vmatpush1.msra.mxu0 0.0
      %968 = vmatprep.subr.mxu0 0.0
      %969 = vmatpush1.msra.mxu0 %v783
      %970 = vmatprep.subr.mxu0 0.0
      %971 = vmatpush2.msra.mxu0 0.0
      %972 = vmatprep.subr.mxu0 0.0
      %973 = vmatpush2.msra.mxu0 0.0
      %974 = vmatprep.subr.mxu0 0.0
      %975 = vmatpush2.msra.mxu0 0.0
      %976 = vmatprep.subr.mxu0 0.0
      %977 = vmatpush2.msra.mxu0 0.0
      %978 = vmatprep.subr.mxu0 0.0
      %979 = vmatpush2.msra.mxu0 0.0
      %980 = vmatprep.subr.mxu0 0.0
      %981 = vmatpush2.msra.mxu0 0.0
      %982 = vmatprep.subr.mxu0 0.0
      %983 = vmatpush2.msra.mxu0 0.0
      %984 = vmatprep.subr.mxu0 0.0
      %985 = vmatpush2.msra.mxu0 0.0
      %986 = vmatprep.subr.mxu0 0.0
      %987 = vmatpush2.msra.mxu0 0.0
      %988 = vmatprep.subr.mxu0 0.0
      %989 = vmatpush2.msra.mxu0 0.0
      %990 = vmatprep.subr.mxu0 0.0
      %991 = vmatpush2.msra.mxu0 0.0
      %992 = vmatprep.subr.mxu0 0.0
      %993 = vmatpush2.msra.mxu0 0.0
      %994 = vmatprep.subr.mxu0 0.0
      %995 = vmatpush2.msra.mxu0 0.0
      %996 = vmatprep.subr.mxu0 0.0
      %997 = vmatpush2.msra.mxu0 0.0
      %998 = vmatprep.subr.mxu0 0.0
      %999 = vmatpush2.msra.mxu0 0.0
      %1000 = vmatprep.subr.mxu0 0.0
      %1001 = vmatpush2.msra.mxu0 0.0
      %1002 = vmatprep.mubr.f32.mxu0 0.0
      %1003 = vmatmul.mubr.f32.gmra.mxu0 %v936
      %v1004 = vpop.f32.mrf.mxu0
      %v1005 = vadd.f32 0.0, %v1004
      %v1006 = vpop.f32.mrf.mxu0
      %1007 = vdwg.mxu0
      %v1008 = vsel %vm863, %v710, 0
      %1010 = vmatprep.subr.mxu0 0.0
      %1011 = vmatpush1.msra.mxu0 0.0
      %1012 = vmatprep.subr.mxu0 0.0
      %1013 = vmatpush1.msra.mxu0 0.0
      %1014 = vmatprep.subr.mxu0 0.0
      %1015 = vmatpush1.msra.mxu0 0.0
      %1016 = vmatprep.subr.mxu0 0.0
      %1017 = vmatpush1.msra.mxu0 0.0
      %1018 = vmatprep.subr.mxu0 0.0
      %1019 = vmatpush1.msra.mxu0 0.0
      %1020 = vmatprep.subr.mxu0 0.0
      %1021 = vmatpush1.msra.mxu0 0.0
      %1022 = vmatprep.subr.mxu0 0.0
      %1023 = vmatpush1.msra.mxu0 0.0
      %1024 = vmatprep.subr.mxu0 0.0
      %1025 = vmatpush1.msra.mxu0 0.0
      %1026 = vmatprep.subr.mxu0 0.0
      %1027 = vmatpush1.msra.mxu0 0.0
      %1028 = vmatprep.subr.mxu0 0.0
      %1029 = vmatpush1.msra.mxu0 0.0
      %1030 = vmatprep.subr.mxu0 0.0
      %1031 = vmatpush1.msra.mxu0 0.0
      %1032 = vmatprep.subr.mxu0 0.0
      %1033 = vmatpush1.msra.mxu0 0.0
      %1034 = vmatprep.subr.mxu0 0.0
      %1035 = vmatpush1.msra.mxu0 0.0
      %1036 = vmatprep.subr.mxu0 0.0
      %1037 = vmatpush1.msra.mxu0 0.0
      %1038 = vmatprep.subr.mxu0 0.0
      %1039 = vmatpush1.msra.mxu0 0.0
      %1040 = vmatprep.subr.mxu0 0.0
      %1041 = vmatpush1.msra.mxu0 %v815
      %1042 = vmatprep.subr.mxu0 0.0
      %1043 = vmatpush2.msra.mxu0 0.0
      %1044 = vmatprep.subr.mxu0 0.0
      %1045 = vmatpush2.msra.mxu0 0.0
      %1046 = vmatprep.subr.mxu0 0.0
      %1047 = vmatpush2.msra.mxu0 0.0
      %1048 = vmatprep.subr.mxu0 0.0
      %1049 = vmatpush2.msra.mxu0 0.0
      %1050 = vmatprep.subr.mxu0 0.0
      %1051 = vmatpush2.msra.mxu0 0.0
      %1052 = vmatprep.subr.mxu0 0.0
      %1053 = vmatpush2.msra.mxu0 0.0
      %1054 = vmatprep.subr.mxu0 0.0
      %1055 = vmatpush2.msra.mxu0 0.0
      %1056 = vmatprep.subr.mxu0 0.0
      %1057 = vmatpush2.msra.mxu0 0.0
      %1058 = vmatprep.subr.mxu0 0.0
      %1059 = vmatpush2.msra.mxu0 0.0
      %1060 = vmatprep.subr.mxu0 0.0
      %1061 = vmatpush2.msra.mxu0 0.0
      %1062 = vmatprep.subr.mxu0 0.0
      %1063 = vmatpush2.msra.mxu0 0.0
      %1064 = vmatprep.subr.mxu0 0.0
      %1065 = vmatpush2.msra.mxu0 0.0
      %1066 = vmatprep.subr.mxu0 0.0
      %1067 = vmatpush2.msra.mxu0 0.0
      %1068 = vmatprep.subr.mxu0 0.0
      %1069 = vmatpush2.msra.mxu0 0.0
      %1070 = vmatprep.subr.mxu0 0.0
      %1071 = vmatpush2.msra.mxu0 0.0
      %1072 = vmatprep.subr.mxu0 0.0
      %1073 = vmatpush2.msra.mxu0 0.0
      %1074 = vmatprep.mubr.f32.mxu0 0.0
      %1075 = vmatmul.mubr.f32.gmra.mxu0 %v1008
      %v1076 = vpop.f32.mrf.mxu0
      %v1077 = vadd.f32 0.0, %v1076
      %v1078 = vpop.f32.mrf.mxu0
      %1079 = vdwg.mxu0
      %v1080 = vsel %vm863, %v712, 0
      %1082 = vmatprep.subr.mxu0 0.0
      %1083 = vmatpush1.msra.mxu0 0.0
      %1084 = vmatprep.subr.mxu0 0.0
      %1085 = vmatpush1.msra.mxu0 0.0
      %1086 = vmatprep.subr.mxu0 0.0
      %1087 = vmatpush1.msra.mxu0 0.0
      %1088 = vmatprep.subr.mxu0 0.0
      %1089 = vmatpush1.msra.mxu0 0.0
      %1090 = vmatprep.subr.mxu0 0.0
      %1091 = vmatpush1.msra.mxu0 0.0
      %1092 = vmatprep.subr.mxu0 0.0
      %1093 = vmatpush1.msra.mxu0 0.0
      %1094 = vmatprep.subr.mxu0 0.0
      %1095 = vmatpush1.msra.mxu0 0.0
      %1096 = vmatprep.subr.mxu0 0.0
      %1097 = vmatpush1.msra.mxu0 0.0
      %1098 = vmatprep.subr.mxu0 0.0
      %1099 = vmatpush1.msra.mxu0 0.0
      %1100 = vmatprep.subr.mxu0 0.0
      %1101 = vmatpush1.msra.mxu0 0.0
      %1102 = vmatprep.subr.mxu0 0.0
      %1103 = vmatpush1.msra.mxu0 0.0
      %1104 = vmatprep.subr.mxu0 0.0
      %1105 = vmatpush1.msra.mxu0 0.0
      %1106 = vmatprep.subr.mxu0 0.0
      %1107 = vmatpush1.msra.mxu0 0.0
      %1108 = vmatprep.subr.mxu0 0.0
      %1109 = vmatpush1.msra.mxu0 0.0
      %1110 = vmatprep.subr.mxu0 0.0
      %1111 = vmatpush1.msra.mxu0 0.0
      %1112 = vmatprep.subr.mxu0 0.0
      %1113 = vmatpush1.msra.mxu0 %v847
      %1114 = vmatprep.subr.mxu0 0.0
      %1115 = vmatpush2.msra.mxu0 0.0
      %1116 = vmatprep.subr.mxu0 0.0
      %1117 = vmatpush2.msra.mxu0 0.0
      %1118 = vmatprep.subr.mxu0 0.0
      %1119 = vmatpush2.msra.mxu0 0.0
      %1120 = vmatprep.subr.mxu0 0.0
      %1121 = vmatpush2.msra.mxu0 0.0
      %1122 = vmatprep.subr.mxu0 0.0
      %1123 = vmatpush2.msra.mxu0 0.0
      %1124 = vmatprep.subr.mxu0 0.0
      %1125 = vmatpush2.msra.mxu0 0.0
      %1126 = vmatprep.subr.mxu0 0.0
      %1127 = vmatpush2.msra.mxu0 0.0
      %1128 = vmatprep.subr.mxu0 0.0
      %1129 = vmatpush2.msra.mxu0 0.0
      %1130 = vmatprep.subr.mxu0 0.0
      %1131 = vmatpush2.msra.mxu0 0.0
      %1132 = vmatprep.subr.mxu0 0.0
      %1133 = vmatpush2.msra.mxu0 0.0
      %1134 = vmatprep.subr.mxu0 0.0
      %1135 = vmatpush2.msra.mxu0 0.0
      %1136 = vmatprep.subr.mxu0 0.0
      %1137 = vmatpush2.msra.mxu0 0.0
      %1138 = vmatprep.subr.mxu0 0.0
      %1139 = vmatpush2.msra.mxu0 0.0
      %1140 = vmatprep.subr.mxu0 0.0
      %1141 = vmatpush2.msra.mxu0 0.0
      %1142 = vmatprep.subr.mxu0 0.0
      %1143 = vmatpush2.msra.mxu0 0.0
      %1144 = vmatprep.subr.mxu0 0.0
      %1145 = vmatpush2.msra.mxu0 0.0
      %1146 = vmatprep.mubr.f32.mxu0 0.0
      %1147 = vmatmul.mubr.f32.gmra.mxu0 %v1080
      %v1148 = vpop.f32.mrf.mxu0
      %v1149 = vadd.f32 0.0, %v1148
      %v1150 = vpop.f32.mrf.mxu0
      %1151 = vdwg.mxu0
      %v1152 = vsel %vm863, %v933, -inf
      %1153 = vmax.xlane.f32.xlu0 %v1152
      %v1154 = vpop.xlane.xlu0 %1153
      %v1155 = vsel %vm863, %v1005, -inf
      %1156 = vmax.xlane.f32.xlu0 %v1155
      %v1157 = vpop.xlane.xlu0 %1156
      %v1158 = vsel %vm863, %v1077, -inf
      %1159 = vmax.xlane.f32.xlu0 %v1158
      %v1160 = vpop.xlane.xlu0 %1159
      %v1161 = vsel %vm863, %v1149, -inf
      %1162 = vmax.xlane.f32.xlu0 %v1161
      %v1163 = vpop.xlane.xlu0 %1162
      %v1164 = vsub.f32 %v933, %v1154
      %v1165 = vsub.f32 %v1005, %v1157
      %v1166 = vsub.f32 %v1077, %v1160
      %v1167 = vsub.f32 %v1149, %v1163
      %v1168 = vmul.f32 %v1164, 1.442695
      %v1169 = vpow.pop %v1168
      %v1170 = vmul.f32 %v1165, 1.442695
      %v1171 = vpow.pop %v1170
      %v1172 = vmul.f32 %v1166, 1.442695
      %v1173 = vpow.pop %v1172
      %v1174 = vmul.f32 %v1167, 1.442695
      %v1175 = vpow.pop %v1174
      %v1176 = vsel %vm863, %v1169, 0.0
      %1177 = vadd.xlane.f32.xlu0 %v1176
      %v1178 = vpop.xlane.xlu0 %1177
      %v1179 = vsel %vm863, %v1171, 0.0
      %1180 = vadd.xlane.f32.xlu0 %v1179
      %v1181 = vpop.xlane.xlu0 %1180
      %v1182 = vsel %vm863, %v1173, 0.0
      %1183 = vadd.xlane.f32.xlu0 %v1182
      %v1184 = vpop.xlane.xlu0 %1183
      %v1185 = vsel %vm863, %v1175, 0.0
      %1186 = vadd.xlane.f32.xlu0 %v1185
      %v1187 = vpop.xlane.xlu0 %1186
      %v1188 = vrcp.pop %v1178
      %v1189 = vrcp.pop %v1181
      %v1190 = vrcp.pop %v1184
      %v1191 = vrcp.pop %v1187
      %v1192 = vmul.f32 %v1169, %v1188
      %v1193 = vmul.f32 %v1171, %v1189
      %v1194 = vmul.f32 %v1173, %v1190
      %v1195 = vmul.f32 %v1175, %v1191
      %1196 = vxpose.xlu0.b32.start [1/16] %v703, 128
      %1197 = vxpose.xlu0.b32.cont [2/16] 0.0, 128
      %1198 = vxpose.xlu0.b32.cont [3/16] 0.0, 128
      %1199 = vxpose.xlu0.b32.cont [4/16] 0.0, 128
      %1200 = vxpose.xlu0.b32.cont [5/16] 0.0, 128
      %1201 = vxpose.xlu0.b32.cont [6/16] 0.0, 128
      %1202 = vxpose.xlu0.b32.cont [7/16] 0.0, 128
      %1203 = vxpose.xlu0.b32.cont [8/16] 0.0, 128
      %1204 = vxpose.xlu0.b32.cont [9/16] 0.0, 128
      %1205 = vxpose.xlu0.b32.cont [10/16] 0.0, 128
      %1206 = vxpose.xlu0.b32.cont [11/16] 0.0, 128
      %1207 = vxpose.xlu0.b32.cont [12/16] 0.0, 128
      %1208 = vxpose.xlu0.b32.cont [13/16] 0.0, 128
      %1209 = vxpose.xlu0.b32.cont [14/16] 0.0, 128
      %1210 = vxpose.xlu0.b32.cont [15/16] 0.0, 128
      %1211 = vxpose.xlu0.b32.end [16/16] 0.0, 128
      %v1212 = vpop.trf.xlu0
      %v1213 = vpop.trf.xlu0
      %v1214 = vpop.trf.xlu0
      %v1215 = vpop.trf.xlu0
      %v1216 = vpop.trf.xlu0
      %v1217 = vpop.trf.xlu0
      %v1218 = vpop.trf.xlu0
      %v1219 = vpop.trf.xlu0
      %v1220 = vpop.trf.xlu0
      %v1221 = vpop.trf.xlu0
      %v1222 = vpop.trf.xlu0
      %v1223 = vpop.trf.xlu0
      %v1224 = vpop.trf.xlu0
      %v1225 = vpop.trf.xlu0
      %v1226 = vpop.trf.xlu0
      %v1227 = vpop.trf.xlu0
      %1228 = vxpose.xlu0.b32.start [1/16] %v715, 128
      %1229 = vxpose.xlu0.b32.cont [2/16] 0.0, 128
      %1230 = vxpose.xlu0.b32.cont [3/16] 0.0, 128
      %1231 = vxpose.xlu0.b32.cont [4/16] 0.0, 128
      %1232 = vxpose.xlu0.b32.cont [5/16] 0.0, 128
      %1233 = vxpose.xlu0.b32.cont [6/16] 0.0, 128
      %1234 = vxpose.xlu0.b32.cont [7/16] 0.0, 128
      %1235 = vxpose.xlu0.b32.cont [8/16] 0.0, 128
      %1236 = vxpose.xlu0.b32.cont [9/16] 0.0, 128
      %1237 = vxpose.xlu0.b32.cont [10/16] 0.0, 128
      %1238 = vxpose.xlu0.b32.cont [11/16] 0.0, 128
      %1239 = vxpose.xlu0.b32.cont [12/16] 0.0, 128
      %1240 = vxpose.xlu0.b32.cont [13/16] 0.0, 128
      %1241 = vxpose.xlu0.b32.cont [14/16] 0.0, 128
      %1242 = vxpose.xlu0.b32.cont [15/16] 0.0, 128
      %1243 = vxpose.xlu0.b32.end [16/16] 0.0, 128
      %v1244 = vpop.trf.xlu0
      %v1245 = vpop.trf.xlu0
      %v1246 = vpop.trf.xlu0
      %v1247 = vpop.trf.xlu0
      %v1248 = vpop.trf.xlu0
      %v1249 = vpop.trf.xlu0
      %v1250 = vpop.trf.xlu0
      %v1251 = vpop.trf.xlu0
      %v1252 = vpop.trf.xlu0
      %v1253 = vpop.trf.xlu0
      %v1254 = vpop.trf.xlu0
      %v1255 = vpop.trf.xlu0
      %v1256 = vpop.trf.xlu0
      %v1257 = vpop.trf.xlu0
      %v1258 = vpop.trf.xlu0
      %v1259 = vpop.trf.xlu0
      %1260 = vxpose.xlu0.b32.start [1/16] %v718, 128
      %1261 = vxpose.xlu0.b32.cont [2/16] 0.0, 128
      %1262 = vxpose.xlu0.b32.cont [3/16] 0.0, 128
      %1263 = vxpose.xlu0.b32.cont [4/16] 0.0, 128
      %1264 = vxpose.xlu0.b32.cont [5/16] 0.0, 128
      %1265 = vxpose.xlu0.b32.cont [6/16] 0.0, 128
      %1266 = vxpose.xlu0.b32.cont [7/16] 0.0, 128
      %1267 = vxpose.xlu0.b32.cont [8/16] 0.0, 128
      %1268 = vxpose.xlu0.b32.cont [9/16] 0.0, 128
      %1269 = vxpose.xlu0.b32.cont [10/16] 0.0, 128
      %1270 = vxpose.xlu0.b32.cont [11/16] 0.0, 128
      %1271 = vxpose.xlu0.b32.cont [12/16] 0.0, 128
      %1272 = vxpose.xlu0.b32.cont [13/16] 0.0, 128
      %1273 = vxpose.xlu0.b32.cont [14/16] 0.0, 128
      %1274 = vxpose.xlu0.b32.cont [15/16] 0.0, 128
      %1275 = vxpose.xlu0.b32.end [16/16] 0.0, 128
      %v1276 = vpop.trf.xlu0
      %v1277 = vpop.trf.xlu0
      %v1278 = vpop.trf.xlu0
      %v1279 = vpop.trf.xlu0
      %v1280 = vpop.trf.xlu0
      %v1281 = vpop.trf.xlu0
      %v1282 = vpop.trf.xlu0
      %v1283 = vpop.trf.xlu0
      %v1284 = vpop.trf.xlu0
      %v1285 = vpop.trf.xlu0
      %v1286 = vpop.trf.xlu0
      %v1287 = vpop.trf.xlu0
      %v1288 = vpop.trf.xlu0
      %v1289 = vpop.trf.xlu0
      %v1290 = vpop.trf.xlu0
      %v1291 = vpop.trf.xlu0
      %1292 = vxpose.xlu0.b32.start [1/16] %v721, 128
      %1293 = vxpose.xlu0.b32.cont [2/16] 0.0, 128
      %1294 = vxpose.xlu0.b32.cont [3/16] 0.0, 128
      %1295 = vxpose.xlu0.b32.cont [4/16] 0.0, 128
      %1296 = vxpose.xlu0.b32.cont [5/16] 0.0, 128
      %1297 = vxpose.xlu0.b32.cont [6/16] 0.0, 128
      %1298 = vxpose.xlu0.b32.cont [7/16] 0.0, 128
      %1299 = vxpose.xlu0.b32.cont [8/16] 0.0, 128
      %1300 = vxpose.xlu0.b32.cont [9/16] 0.0, 128
      %1301 = vxpose.xlu0.b32.cont [10/16] 0.0, 128
      %1302 = vxpose.xlu0.b32.cont [11/16] 0.0, 128
      %1303 = vxpose.xlu0.b32.cont [12/16] 0.0, 128
      %1304 = vxpose.xlu0.b32.cont [13/16] 0.0, 128
      %1305 = vxpose.xlu0.b32.cont [14/16] 0.0, 128
      %1306 = vxpose.xlu0.b32.cont [15/16] 0.0, 128
      %1307 = vxpose.xlu0.b32.end [16/16] 0.0, 128
      %v1308 = vpop.trf.xlu0
      %v1309 = vpop.trf.xlu0
      %v1310 = vpop.trf.xlu0
      %v1311 = vpop.trf.xlu0
      %v1312 = vpop.trf.xlu0
      %v1313 = vpop.trf.xlu0
      %v1314 = vpop.trf.xlu0
      %v1315 = vpop.trf.xlu0
      %v1316 = vpop.trf.xlu0
      %v1317 = vpop.trf.xlu0
      %v1318 = vpop.trf.xlu0
      %v1319 = vpop.trf.xlu0
      %v1320 = vpop.trf.xlu0
      %v1321 = vpop.trf.xlu0
      %v1322 = vpop.trf.xlu0
      %v1323 = vpop.trf.xlu0
      %v1325 = vsel %vm863, %v1212, 0
      %v1328 = vsel %vm863, %v1192, 0
      %1330 = vmatprep.subr.mxu0 0.0
      %1331 = vmatpush1.xpose.msra.mxu0 0.0
      %1332 = vmatprep.subr.mxu0 0.0
      %1333 = vmatpush1.xpose.msra.mxu0 0.0
      %1334 = vmatprep.subr.mxu0 0.0
      %1335 = vmatpush1.xpose.msra.mxu0 0.0
      %1336 = vmatprep.subr.mxu0 0.0
      %1337 = vmatpush1.xpose.msra.mxu0 0.0
      %1338 = vmatprep.subr.mxu0 0.0
      %1339 = vmatpush1.xpose.msra.mxu0 0.0
      %1340 = vmatprep.subr.mxu0 0.0
      %1341 = vmatpush1.xpose.msra.mxu0 0.0
      %1342 = vmatprep.subr.mxu0 0.0
      %1343 = vmatpush1.xpose.msra.mxu0 0.0
      %1344 = vmatprep.subr.mxu0 0.0
      %1345 = vmatpush1.xpose.msra.mxu0 0.0
      %1346 = vmatprep.subr.mxu0 0.0
      %1347 = vmatpush1.xpose.msra.mxu0 0.0
      %1348 = vmatprep.subr.mxu0 0.0
      %1349 = vmatpush1.xpose.msra.mxu0 0.0
      %1350 = vmatprep.subr.mxu0 0.0
      %1351 = vmatpush1.xpose.msra.mxu0 0.0
      %1352 = vmatprep.subr.mxu0 0.0
      %1353 = vmatpush1.xpose.msra.mxu0 0.0
      %1354 = vmatprep.subr.mxu0 0.0
      %1355 = vmatpush1.xpose.msra.mxu0 0.0
      %1356 = vmatprep.subr.mxu0 0.0
      %1357 = vmatpush1.xpose.msra.mxu0 0.0
      %1358 = vmatprep.subr.mxu0 0.0
      %1359 = vmatpush1.xpose.msra.mxu0 0.0
      %1360 = vmatprep.subr.mxu0 0.0
      %1361 = vmatpush1.xpose.msra.mxu0 %v1328
      %1362 = vmatprep.subr.mxu0 0.0
      %1363 = vmatpush2.xpose.msra.mxu0 0.0
      %1364 = vmatprep.subr.mxu0 0.0
      %1365 = vmatpush2.xpose.msra.mxu0 0.0
      %1366 = vmatprep.subr.mxu0 0.0
      %1367 = vmatpush2.xpose.msra.mxu0 0.0
      %1368 = vmatprep.subr.mxu0 0.0
      %1369 = vmatpush2.xpose.msra.mxu0 0.0
      %1370 = vmatprep.subr.mxu0 0.0
      %1371 = vmatpush2.xpose.msra.mxu0 0.0
      %1372 = vmatprep.subr.mxu0 0.0
      %1373 = vmatpush2.xpose.msra.mxu0 0.0
      %1374 = vmatprep.subr.mxu0 0.0
      %1375 = vmatpush2.xpose.msra.mxu0 0.0
      %1376 = vmatprep.subr.mxu0 0.0
      %1377 = vmatpush2.xpose.msra.mxu0 0.0
      %1378 = vmatprep.subr.mxu0 0.0
      %1379 = vmatpush2.xpose.msra.mxu0 0.0
      %1380 = vmatprep.subr.mxu0 0.0
      %1381 = vmatpush2.xpose.msra.mxu0 0.0
      %1382 = vmatprep.subr.mxu0 0.0
      %1383 = vmatpush2.xpose.msra.mxu0 0.0
      %1384 = vmatprep.subr.mxu0 0.0
      %1385 = vmatpush2.xpose.msra.mxu0 0.0
      %1386 = vmatprep.subr.mxu0 0.0
      %1387 = vmatpush2.xpose.msra.mxu0 0.0
      %1388 = vmatprep.subr.mxu0 0.0
      %1389 = vmatpush2.xpose.msra.mxu0 0.0
      %1390 = vmatprep.subr.mxu0 0.0
      %1391 = vmatpush2.xpose.msra.mxu0 0.0
      %1392 = vmatprep.subr.mxu0 0.0
      %1393 = vmatpush2.xpose.msra.mxu0 0.0
      %1394 = vmatprep.mubr.f32.mxu0 0.0
      %1395 = vmatmul.mubr.f32.gmra.mxu0 %v1325
      %v1396 = vpop.f32.mrf.mxu0
      %v1397 = vadd.f32 0.0, %v1396
      %v1398 = vpop.f32.mrf.mxu0
      %1399 = vdwg.mxu0
      %v1401 = vsel %vm863, %v1244, 0
      %v1404 = vsel %vm863, %v1193, 0
      %1406 = vmatprep.subr.mxu0 0.0
      %1407 = vmatpush1.xpose.msra.mxu0 0.0
      %1408 = vmatprep.subr.mxu0 0.0
      %1409 = vmatpush1.xpose.msra.mxu0 0.0
      %1410 = vmatprep.subr.mxu0 0.0
      %1411 = vmatpush1.xpose.msra.mxu0 0.0
      %1412 = vmatprep.subr.mxu0 0.0
      %1413 = vmatpush1.xpose.msra.mxu0 0.0
      %1414 = vmatprep.subr.mxu0 0.0
      %1415 = vmatpush1.xpose.msra.mxu0 0.0
      %1416 = vmatprep.subr.mxu0 0.0
      %1417 = vmatpush1.xpose.msra.mxu0 0.0
      %1418 = vmatprep.subr.mxu0 0.0
      %1419 = vmatpush1.xpose.msra.mxu0 0.0
      %1420 = vmatprep.subr.mxu0 0.0
      %1421 = vmatpush1.xpose.msra.mxu0 0.0
      %1422 = vmatprep.subr.mxu0 0.0
      %1423 = vmatpush1.xpose.msra.mxu0 0.0
      %1424 = vmatprep.subr.mxu0 0.0
      %1425 = vmatpush1.xpose.msra.mxu0 0.0
      %1426 = vmatprep.subr.mxu0 0.0
      %1427 = vmatpush1.xpose.msra.mxu0 0.0
      %1428 = vmatprep.subr.mxu0 0.0
      %1429 = vmatpush1.xpose.msra.mxu0 0.0
      %1430 = vmatprep.subr.mxu0 0.0
      %1431 = vmatpush1.xpose.msra.mxu0 0.0
      %1432 = vmatprep.subr.mxu0 0.0
      %1433 = vmatpush1.xpose.msra.mxu0 0.0
      %1434 = vmatprep.subr.mxu0 0.0
      %1435 = vmatpush1.xpose.msra.mxu0 0.0
      %1436 = vmatprep.subr.mxu0 0.0
      %1437 = vmatpush1.xpose.msra.mxu0 %v1404
      %1438 = vmatprep.subr.mxu0 0.0
      %1439 = vmatpush2.xpose.msra.mxu0 0.0
      %1440 = vmatprep.subr.mxu0 0.0
      %1441 = vmatpush2.xpose.msra.mxu0 0.0
      %1442 = vmatprep.subr.mxu0 0.0
      %1443 = vmatpush2.xpose.msra.mxu0 0.0
      %1444 = vmatprep.subr.mxu0 0.0
      %1445 = vmatpush2.xpose.msra.mxu0 0.0
      %1446 = vmatprep.subr.mxu0 0.0
      %1447 = vmatpush2.xpose.msra.mxu0 0.0
      %1448 = vmatprep.subr.mxu0 0.0
      %1449 = vmatpush2.xpose.msra.mxu0 0.0
      %1450 = vmatprep.subr.mxu0 0.0
      %1451 = vmatpush2.xpose.msra.mxu0 0.0
      %1452 = vmatprep.subr.mxu0 0.0
      %1453 = vmatpush2.xpose.msra.mxu0 0.0
      %1454 = vmatprep.subr.mxu0 0.0
      %1455 = vmatpush2.xpose.msra.mxu0 0.0
      %1456 = vmatprep.subr.mxu0 0.0
      %1457 = vmatpush2.xpose.msra.mxu0 0.0
      %1458 = vmatprep.subr.mxu0 0.0
      %1459 = vmatpush2.xpose.msra.mxu0 0.0
      %1460 = vmatprep.subr.mxu0 0.0
      %1461 = vmatpush2.xpose.msra.mxu0 0.0
      %1462 = vmatprep.subr.mxu0 0.0
      %1463 = vmatpush2.xpose.msra.mxu0 0.0
      %1464 = vmatprep.subr.mxu0 0.0
      %1465 = vmatpush2.xpose.msra.mxu0 0.0
      %1466 = vmatprep.subr.mxu0 0.0
      %1467 = vmatpush2.xpose.msra.mxu0 0.0
      %1468 = vmatprep.subr.mxu0 0.0
      %1469 = vmatpush2.xpose.msra.mxu0 0.0
      %1470 = vmatprep.mubr.f32.mxu0 0.0
      %1471 = vmatmul.mubr.f32.gmra.mxu0 %v1401
      %v1472 = vpop.f32.mrf.mxu0
      %v1473 = vadd.f32 0.0, %v1472
      %v1474 = vpop.f32.mrf.mxu0
      %1475 = vdwg.mxu0
      %v1477 = vsel %vm863, %v1276, 0
      %v1480 = vsel %vm863, %v1194, 0
      %1482 = vmatprep.subr.mxu0 0.0
      %1483 = vmatpush1.xpose.msra.mxu0 0.0
      %1484 = vmatprep.subr.mxu0 0.0
      %1485 = vmatpush1.xpose.msra.mxu0 0.0
      %1486 = vmatprep.subr.mxu0 0.0
      %1487 = vmatpush1.xpose.msra.mxu0 0.0
      %1488 = vmatprep.subr.mxu0 0.0
      %1489 = vmatpush1.xpose.msra.mxu0 0.0
      %1490 = vmatprep.subr.mxu0 0.0
      %1491 = vmatpush1.xpose.msra.mxu0 0.0
      %1492 = vmatprep.subr.mxu0 0.0
      %1493 = vmatpush1.xpose.msra.mxu0 0.0
      %1494 = vmatprep.subr.mxu0 0.0
      %1495 = vmatpush1.xpose.msra.mxu0 0.0
      %1496 = vmatprep.subr.mxu0 0.0
      %1497 = vmatpush1.xpose.msra.mxu0 0.0
      %1498 = vmatprep.subr.mxu0 0.0
      %1499 = vmatpush1.xpose.msra.mxu0 0.0
      %1500 = vmatprep.subr.mxu0 0.0
      %1501 = vmatpush1.xpose.msra.mxu0 0.0
      %1502 = vmatprep.subr.mxu0 0.0
      %1503 = vmatpush1.xpose.msra.mxu0 0.0
      %1504 = vmatprep.subr.mxu0 0.0
      %1505 = vmatpush1.xpose.msra.mxu0 0.0
      %1506 = vmatprep.subr.mxu0 0.0
      %1507 = vmatpush1.xpose.msra.mxu0 0.0
      %1508 = vmatprep.subr.mxu0 0.0
      %1509 = vmatpush1.xpose.msra.mxu0 0.0
      %1510 = vmatprep.subr.mxu0 0.0
      %1511 = vmatpush1.xpose.msra.mxu0 0.0
      %1512 = vmatprep.subr.mxu0 0.0
      %1513 = vmatpush1.xpose.msra.mxu0 %v1480
      %1514 = vmatprep.subr.mxu0 0.0
      %1515 = vmatpush2.xpose.msra.mxu0 0.0
      %1516 = vmatprep.subr.mxu0 0.0
      %1517 = vmatpush2.xpose.msra.mxu0 0.0
      %1518 = vmatprep.subr.mxu0 0.0
      %1519 = vmatpush2.xpose.msra.mxu0 0.0
      %1520 = vmatprep.subr.mxu0 0.0
      %1521 = vmatpush2.xpose.msra.mxu0 0.0
      %1522 = vmatprep.subr.mxu0 0.0
      %1523 = vmatpush2.xpose.msra.mxu0 0.0
      %1524 = vmatprep.subr.mxu0 0.0
      %1525 = vmatpush2.xpose.msra.mxu0 0.0
      %1526 = vmatprep.subr.mxu0 0.0
      %1527 = vmatpush2.xpose.msra.mxu0 0.0
      %1528 = vmatprep.subr.mxu0 0.0
      %1529 = vmatpush2.xpose.msra.mxu0 0.0
      %1530 = vmatprep.subr.mxu0 0.0
      %1531 = vmatpush2.xpose.msra.mxu0 0.0
      %1532 = vmatprep.subr.mxu0 0.0
      %1533 = vmatpush2.xpose.msra.mxu0 0.0
      %1534 = vmatprep.subr.mxu0 0.0
      %1535 = vmatpush2.xpose.msra.mxu0 0.0
      %1536 = vmatprep.subr.mxu0 0.0
      %1537 = vmatpush2.xpose.msra.mxu0 0.0
      %1538 = vmatprep.subr.mxu0 0.0
      %1539 = vmatpush2.xpose.msra.mxu0 0.0
      %1540 = vmatprep.subr.mxu0 0.0
      %1541 = vmatpush2.xpose.msra.mxu0 0.0
      %1542 = vmatprep.subr.mxu0 0.0
      %1543 = vmatpush2.xpose.msra.mxu0 0.0
      %1544 = vmatprep.subr.mxu0 0.0
      %1545 = vmatpush2.xpose.msra.mxu0 0.0
      %1546 = vmatprep.mubr.f32.mxu0 0.0
      %1547 = vmatmul.mubr.f32.gmra.mxu0 %v1477
      %v1548 = vpop.f32.mrf.mxu0
      %v1549 = vadd.f32 0.0, %v1548
      %v1550 = vpop.f32.mrf.mxu0
      %1551 = vdwg.mxu0
      %v1553 = vsel %vm863, %v1308, 0
      %v1556 = vsel %vm863, %v1195, 0
      %1558 = vmatprep.subr.mxu0 0.0
      %1559 = vmatpush1.xpose.msra.mxu0 0.0
      %1560 = vmatprep.subr.mxu0 0.0
      %1561 = vmatpush1.xpose.msra.mxu0 0.0
      %1562 = vmatprep.subr.mxu0 0.0
      %1563 = vmatpush1.xpose.msra.mxu0 0.0
      %1564 = vmatprep.subr.mxu0 0.0
      %1565 = vmatpush1.xpose.msra.mxu0 0.0
      %1566 = vmatprep.subr.mxu0 0.0
      %1567 = vmatpush1.xpose.msra.mxu0 0.0
      %1568 = vmatprep.subr.mxu0 0.0
      %1569 = vmatpush1.xpose.msra.mxu0 0.0
      %1570 = vmatprep.subr.mxu0 0.0
      %1571 = vmatpush1.xpose.msra.mxu0 0.0
      %1572 = vmatprep.subr.mxu0 0.0
      %1573 = vmatpush1.xpose.msra.mxu0 0.0
      %1574 = vmatprep.subr.mxu0 0.0
      %1575 = vmatpush1.xpose.msra.mxu0 0.0
      %1576 = vmatprep.subr.mxu0 0.0
      %1577 = vmatpush1.xpose.msra.mxu0 0.0
      %1578 = vmatprep.subr.mxu0 0.0
      %1579 = vmatpush1.xpose.msra.mxu0 0.0
      %1580 = vmatprep.subr.mxu0 0.0
      %1581 = vmatpush1.xpose.msra.mxu0 0.0
      %1582 = vmatprep.subr.mxu0 0.0
      %1583 = vmatpush1.xpose.msra.mxu0 0.0
      %1584 = vmatprep.subr.mxu0 0.0
      %1585 = vmatpush1.xpose.msra.mxu0 0.0
      %1586 = vmatprep.subr.mxu0 0.0
      %1587 = vmatpush1.xpose.msra.mxu0 0.0
      %1588 = vmatprep.subr.mxu0 0.0
      %1589 = vmatpush1.xpose.msra.mxu0 %v1556
      %1590 = vmatprep.subr.mxu0 0.0
      %1591 = vmatpush2.xpose.msra.mxu0 0.0
      %1592 = vmatprep.subr.mxu0 0.0
      %1593 = vmatpush2.xpose.msra.mxu0 0.0
      %1594 = vmatprep.subr.mxu0 0.0
      %1595 = vmatpush2.xpose.msra.mxu0 0.0
      %1596 = vmatprep.subr.mxu0 0.0
      %1597 = vmatpush2.xpose.msra.mxu0 0.0
      %1598 = vmatprep.subr.mxu0 0.0
      %1599 = vmatpush2.xpose.msra.mxu0 0.0
      %1600 = vmatprep.subr.mxu0 0.0
      %1601 = vmatpush2.xpose.msra.mxu0 0.0
      %1602 = vmatprep.subr.mxu0 0.0
      %1603 = vmatpush2.xpose.msra.mxu0 0.0
      %1604 = vmatprep.subr.mxu0 0.0
      %1605 = vmatpush2.xpose.msra.mxu0 0.0
      %1606 = vmatprep.subr.mxu0 0.0
      %1607 = vmatpush2.xpose.msra.mxu0 0.0
      %1608 = vmatprep.subr.mxu0 0.0
      %1609 = vmatpush2.xpose.msra.mxu0 0.0
      %1610 = vmatprep.subr.mxu0 0.0
      %1611 = vmatpush2.xpose.msra.mxu0 0.0
      %1612 = vmatprep.subr.mxu0 0.0
      %1613 = vmatpush2.xpose.msra.mxu0 0.0
      %1614 = vmatprep.subr.mxu0 0.0
      %1615 = vmatpush2.xpose.msra.mxu0 0.0
      %1616 = vmatprep.subr.mxu0 0.0
      %1617 = vmatpush2.xpose.msra.mxu0 0.0
      %1618 = vmatprep.subr.mxu0 0.0
      %1619 = vmatpush2.xpose.msra.mxu0 0.0
      %1620 = vmatprep.subr.mxu0 0.0
      %1621 = vmatpush2.xpose.msra.mxu0 0.0
      %1622 = vmatprep.mubr.f32.mxu0 0.0
      %1623 = vmatmul.mubr.f32.gmra.mxu0 %v1553
      %v1624 = vpop.f32.mrf.mxu0
      %v1625 = vadd.f32 0.0, %v1624
      %v1626 = vpop.f32.mrf.mxu0
      %1627 = vdwg.mxu0
      %1628 = vxpose.xlu0.b32.start [1/16] %v1397, 128
      %1629 = vxpose.xlu0.b32.cont [2/16] 0.0, 128
      %1630 = vxpose.xlu0.b32.cont [3/16] 0.0, 128
      %1631 = vxpose.xlu0.b32.cont [4/16] 0.0, 128
      %1632 = vxpose.xlu0.b32.cont [5/16] 0.0, 128
      %1633 = vxpose.xlu0.b32.cont [6/16] 0.0, 128
      %1634 = vxpose.xlu0.b32.cont [7/16] 0.0, 128
      %1635 = vxpose.xlu0.b32.cont [8/16] 0.0, 128
      %1636 = vxpose.xlu0.b32.cont [9/16] 0.0, 128
      %1637 = vxpose.xlu0.b32.cont [10/16] 0.0, 128
      %1638 = vxpose.xlu0.b32.cont [11/16] 0.0, 128
      %1639 = vxpose.xlu0.b32.cont [12/16] 0.0, 128
      %1640 = vxpose.xlu0.b32.cont [13/16] 0.0, 128
      %1641 = vxpose.xlu0.b32.cont [14/16] 0.0, 128
      %1642 = vxpose.xlu0.b32.cont [15/16] 0.0, 128
      %1643 = vxpose.xlu0.b32.end [16/16] 0.0, 128
      %v1644 = vpop.trf.xlu0
      %v1645 = vpop.trf.xlu0
      %v1646 = vpop.trf.xlu0
      %v1647 = vpop.trf.xlu0
      %v1648 = vpop.trf.xlu0
      %v1649 = vpop.trf.xlu0
      %v1650 = vpop.trf.xlu0
      %v1651 = vpop.trf.xlu0
      %v1652 = vpop.trf.xlu0
      %v1653 = vpop.trf.xlu0
      %v1654 = vpop.trf.xlu0
      %v1655 = vpop.trf.xlu0
      %v1656 = vpop.trf.xlu0
      %v1657 = vpop.trf.xlu0
      %v1658 = vpop.trf.xlu0
      %v1659 = vpop.trf.xlu0
      %1660 = vxpose.xlu0.b32.start [1/16] %v1473, 128
      %1661 = vxpose.xlu0.b32.cont [2/16] 0.0, 128
      %1662 = vxpose.xlu0.b32.cont [3/16] 0.0, 128
      %1663 = vxpose.xlu0.b32.cont [4/16] 0.0, 128
      %1664 = vxpose.xlu0.b32.cont [5/16] 0.0, 128
      %1665 = vxpose.xlu0.b32.cont [6/16] 0.0, 128
      %1666 = vxpose.xlu0.b32.cont [7/16] 0.0, 128
      %1667 = vxpose.xlu0.b32.cont [8/16] 0.0, 128
      %1668 = vxpose.xlu0.b32.cont [9/16] 0.0, 128
      %1669 = vxpose.xlu0.b32.cont [10/16] 0.0, 128
      %1670 = vxpose.xlu0.b32.cont [11/16] 0.0, 128
      %1671 = vxpose.xlu0.b32.cont [12/16] 0.0, 128
      %1672 = vxpose.xlu0.b32.cont [13/16] 0.0, 128
      %1673 = vxpose.xlu0.b32.cont [14/16] 0.0, 128
      %1674 = vxpose.xlu0.b32.cont [15/16] 0.0, 128
      %1675 = vxpose.xlu0.b32.end [16/16] 0.0, 128
      %v1676 = vpop.trf.xlu0
      %v1677 = vpop.trf.xlu0
      %v1678 = vpop.trf.xlu0
      %v1679 = vpop.trf.xlu0
      %v1680 = vpop.trf.xlu0
      %v1681 = vpop.trf.xlu0
      %v1682 = vpop.trf.xlu0
      %v1683 = vpop.trf.xlu0
      %v1684 = vpop.trf.xlu0
      %v1685 = vpop.trf.xlu0
      %v1686 = vpop.trf.xlu0
      %v1687 = vpop.trf.xlu0
      %v1688 = vpop.trf.xlu0
      %v1689 = vpop.trf.xlu0
      %v1690 = vpop.trf.xlu0
      %v1691 = vpop.trf.xlu0
      %1692 = vxpose.xlu0.b32.start [1/16] %v1549, 128
      %1693 = vxpose.xlu0.b32.cont [2/16] 0.0, 128
      %1694 = vxpose.xlu0.b32.cont [3/16] 0.0, 128
      %1695 = vxpose.xlu0.b32.cont [4/16] 0.0, 128
      %1696 = vxpose.xlu0.b32.cont [5/16] 0.0, 128
      %1697 = vxpose.xlu0.b32.cont [6/16] 0.0, 128
      %1698 = vxpose.xlu0.b32.cont [7/16] 0.0, 128
      %1699 = vxpose.xlu0.b32.cont [8/16] 0.0, 128
      %1700 = vxpose.xlu0.b32.cont [9/16] 0.0, 128
      %1701 = vxpose.xlu0.b32.cont [10/16] 0.0, 128
      %1702 = vxpose.xlu0.b32.cont [11/16] 0.0, 128
      %1703 = vxpose.xlu0.b32.cont [12/16] 0.0, 128
      %1704 = vxpose.xlu0.b32.cont [13/16] 0.0, 128
      %1705 = vxpose.xlu0.b32.cont [14/16] 0.0, 128
      %1706 = vxpose.xlu0.b32.cont [15/16] 0.0, 128
      %1707 = vxpose.xlu0.b32.end [16/16] 0.0, 128
      %v1708 = vpop.trf.xlu0
      %v1709 = vpop.trf.xlu0
      %v1710 = vpop.trf.xlu0
      %v1711 = vpop.trf.xlu0
      %v1712 = vpop.trf.xlu0
      %v1713 = vpop.trf.xlu0
      %v1714 = vpop.trf.xlu0
      %v1715 = vpop.trf.xlu0
      %v1716 = vpop.trf.xlu0
      %v1717 = vpop.trf.xlu0
      %v1718 = vpop.trf.xlu0
      %v1719 = vpop.trf.xlu0
      %v1720 = vpop.trf.xlu0
      %v1721 = vpop.trf.xlu0
      %v1722 = vpop.trf.xlu0
      %v1723 = vpop.trf.xlu0
      %1724 = vxpose.xlu0.b32.start [1/16] %v1625, 128
      %1725 = vxpose.xlu0.b32.cont [2/16] 0.0, 128
      %1726 = vxpose.xlu0.b32.cont [3/16] 0.0, 128
      %1727 = vxpose.xlu0.b32.cont [4/16] 0.0, 128
      %1728 = vxpose.xlu0.b32.cont [5/16] 0.0, 128
      %1729 = vxpose.xlu0.b32.cont [6/16] 0.0, 128
      %1730 = vxpose.xlu0.b32.cont [7/16] 0.0, 128
      %1731 = vxpose.xlu0.b32.cont [8/16] 0.0, 128
      %1732 = vxpose.xlu0.b32.cont [9/16] 0.0, 128
      %1733 = vxpose.xlu0.b32.cont [10/16] 0.0, 128
      %1734 = vxpose.xlu0.b32.cont [11/16] 0.0, 128
      %1735 = vxpose.xlu0.b32.cont [12/16] 0.0, 128
      %1736 = vxpose.xlu0.b32.cont [13/16] 0.0, 128
      %1737 = vxpose.xlu0.b32.cont [14/16] 0.0, 128
      %1738 = vxpose.xlu0.b32.cont [15/16] 0.0, 128
      %1739 = vxpose.xlu0.b32.end [16/16] 0.0, 128
      %v1740 = vpop.trf.xlu0
      %v1741 = vpop.trf.xlu0
      %v1742 = vpop.trf.xlu0
      %v1743 = vpop.trf.xlu0
      %v1744 = vpop.trf.xlu0
      %v1745 = vpop.trf.xlu0
      %v1746 = vpop.trf.xlu0
      %v1747 = vpop.trf.xlu0
      %v1748 = vpop.trf.xlu0
      %v1749 = vpop.trf.xlu0
      %v1750 = vpop.trf.xlu0
      %v1751 = vpop.trf.xlu0
      %v1752 = vpop.trf.xlu0
      %v1753 = vpop.trf.xlu0
      %v1754 = vpop.trf.xlu0
      %v1755 = vpop.trf.xlu0
      %v1756 = vcombine.low %v1644, %v1708
      %v1757 = vcombine.high %v1644, %v1708
      %v1759 = vunpack.c.l.s4 1983009808
      %v1760 = vunpack.c.0.s8 %v1759
      %v1761 = vlaneseq
      %v1762 = vshrl.u32 %v1761, 7
      %v1763 = vsub.s32 %v1760, %v1762
      %v1764 = vrot.slane %v1756, %v1763
      %v1766 = vunpack.c.l.s4 1983009808
      %v1767 = vunpack.c.0.s8 %v1766
      %v1768 = vlaneseq
      %v1769 = vshrl.u32 %v1768, 7
      %v1770 = vsub.s32 %v1767, %v1769
      %v1771 = vrot.slane %v1757, %v1770
      %v1772 = vcombine.low %v1676, %v1740
      %v1773 = vcombine.high %v1676, %v1740
      %v1775 = vunpack.c.l.s4 1983009808
      %v1776 = vunpack.c.0.s8 %v1775
      %v1777 = vlaneseq
      %v1778 = vshrl.u32 %v1777, 7
      %v1779 = vsub.s32 %v1776, %v1778
      %v1780 = vrot.slane %v1772, %v1779
      %v1782 = vunpack.c.l.s4 1983009808
      %v1783 = vunpack.c.0.s8 %v1782
      %v1784 = vlaneseq
      %v1785 = vshrl.u32 %v1784, 7
      %v1786 = vsub.s32 %v1783, %v1785
      %v1787 = vrot.slane %v1773, %v1786
      %v1788 = vcombine.low %v1764, %v1780
      %v1789 = vcombine.high %v1764, %v1780
      %v1791 = vunpack.c.l.s4 1934713408
      %v1792 = vunpack.c.0.s8 %v1791
      %v1793 = vlaneseq
      %v1794 = vshrl.u32 %v1793, 7
      %v1795 = vsub.s32 %v1792, %v1794
      %v1796 = vrot.slane %v1788, %v1795
      %v1798 = vunpack.c.l.s4 1934713408
      %v1799 = vunpack.c.0.s8 %v1798
      %v1800 = vlaneseq
      %v1801 = vshrl.u32 %v1800, 7
      %v1802 = vsub.s32 %v1799, %v1801
      %v1803 = vrot.slane %v1789, %v1802
      %v1804 = vcombine.low %v1771, %v1787
      %v1805 = vcombine.high %v1771, %v1787
      %v1807 = vunpack.c.l.s4 1934713408
      %v1808 = vunpack.c.0.s8 %v1807
      %v1809 = vlaneseq
      %v1810 = vshrl.u32 %v1809, 7
      %v1811 = vsub.s32 %v1808, %v1810
      %v1812 = vrot.slane %v1804, %v1811
      %v1814 = vunpack.c.l.s4 1934713408
      %v1815 = vunpack.c.0.s8 %v1814
      %v1816 = vlaneseq
      %v1817 = vshrl.u32 %v1816, 7
      %v1818 = vsub.s32 %v1815, %v1817
      %v1819 = vrot.slane %v1805, %v1818
      %v1820 = vcombine.high %v1796, 0.0
      %v1821 = vcombine.high %v1803, 0.0
      %v1822 = vcombine.high %v1812, 0.0
      %v1823 = vcombine.high %v1819, 0.0
      %v1824 = vcombine.low %v1796, %v1803
      %v1826 = vunpack.c.l.s4 1983009808
      %v1827 = vunpack.c.0.s8 %v1826
      %v1828 = vlaneseq
      %v1829 = vshrl.u32 %v1828, 7
      %v1830 = vsub.s32 %v1827, %v1829
      %v1831 = vrot.slane %v1824, %v1830
      %v1832 = vcombine.low %v1820, %v1821
      %v1834 = vunpack.c.l.s4 1983009808
      %v1835 = vunpack.c.0.s8 %v1834
      %v1836 = vlaneseq
      %v1837 = vshrl.u32 %v1836, 7
      %v1838 = vsub.s32 %v1835, %v1837
      %v1839 = vrot.slane %v1832, %v1838
      %v1840 = vcombine.low %v1812, %v1819
      %v1842 = vunpack.c.l.s4 1983009808
      %v1843 = vunpack.c.0.s8 %v1842
      %v1844 = vlaneseq
      %v1845 = vshrl.u32 %v1844, 7
      %v1846 = vsub.s32 %v1843, %v1845
      %v1847 = vrot.slane %v1840, %v1846
      %v1848 = vcombine.low %v1822, %v1823
      %v1850 = vunpack.c.l.s4 1983009808
      %v1851 = vunpack.c.0.s8 %v1850
      %v1852 = vlaneseq
      %v1853 = vshrl.u32 %v1852, 7
      %v1854 = vsub.s32 %v1851, %v1853
      %v1855 = vrot.slane %v1848, %v1854
      %v1856 = vcombine.low %v1831, %v1839
      %v1857 = vcombine.high %v1831, %v1839
      %v1859 = vunpack.c.l.s4 1934713408
      %v1860 = vunpack.c.0.s8 %v1859
      %v1861 = vlaneseq
      %v1862 = vshrl.u32 %v1861, 7
      %v1863 = vsub.s32 %v1860, %v1862
      %v1864 = vrot.slane %v1856, %v1863
      %v1866 = vunpack.c.l.s4 1934713408
      %v1867 = vunpack.c.0.s8 %v1866
      %v1868 = vlaneseq
      %v1869 = vshrl.u32 %v1868, 7
      %v1870 = vsub.s32 %v1867, %v1869
      %v1871 = vrot.slane %v1857, %v1870
      %v1872 = vcombine.low %v1847, %v1855
      %v1873 = vcombine.high %v1847, %v1855
      %v1875 = vunpack.c.l.s4 1934713408
      %v1876 = vunpack.c.0.s8 %v1875
      %v1877 = vlaneseq
      %v1878 = vshrl.u32 %v1877, 7
      %v1879 = vsub.s32 %v1876, %v1878
      %v1880 = vrot.slane %v1872, %v1879
      %v1882 = vunpack.c.l.s4 1934713408
      %v1883 = vunpack.c.0.s8 %v1882
      %v1884 = vlaneseq
      %v1885 = vshrl.u32 %v1884, 7
      %v1886 = vsub.s32 %v1883, %v1885
      %v1887 = vrot.slane %v1873, %v1886
      %v1888 = vcombine.low %v1864, %v1880
      %v1889 = vcombine.high %v1864, %v1880
      %v1890 = vcombine.low %v1871, %v1887
      %v1891 = vcombine.high %v1871, %v1887
      %1893 = vrot.lane.b32.xlu0 %v1889, 8
      %v1894 = vpop.permute.xlu0 %1893
      %1897 = vrot.lane.b32.xlu0 %v1890, 16
      %v1898 = vpop.permute.xlu0 %1897
      %1901 = vrot.lane.b32.xlu0 %v1891, 24
      %v1902 = vpop.permute.xlu0 %1901
      %v1904 = vsel %vm863, %v1888, %v1894
      %vm1905 = vcmask 130048
      %v1906 = vsel %vm1905, %v1904, %v1898
      %vm1907 = vcmask 195584
      %v1908 = vsel %vm1907, %v1906, %v1902
      %v1909 = vld [vmem:[%s6] sm:$0xff]
      %v1910 = vld [vmem:[%s6 + $0x8] sm:$0xff]
      %v1911 = vld [vmem:[%s6 + $0x10] sm:$0xff]
      %v1912 = vld [vmem:[%s6 + $0x18] sm:$0xff]
      %v1913 = vld [vmem:[%s7] sm:$0x1]
      %v1915 = vlaneseq
      %v1916 = vshrl.u32 %v1915, 7
      %v1917 = vsub.s32 0, %v1916
      %v1918 = vrot.slane %v1913, %v1917
      %v1921 = vsel %vm548, %v1908, 0
      %1923 = vmatprep.subr.mxu0 0.0
      %1924 = vmatpush1.msra.mxu0 0.0
      %1925 = vmatprep.subr.mxu0 0.0
      %1926 = vmatpush1.msra.mxu0 0.0
      %1927 = vmatprep.subr.mxu0 0.0
      %1928 = vmatpush1.msra.mxu0 0.0
      %1929 = vmatprep.subr.mxu0 0.0
      %1930 = vmatpush1.msra.mxu0 0.0
      %1931 = vmatprep.subr.mxu0 0.0
      %1932 = vmatpush1.msra.mxu0 0.0
      %1933 = vmatprep.subr.mxu0 0.0
      %1934 = vmatpush1.msra.mxu0 0.0
      %1935 = vmatprep.subr.mxu0 0.0
      %1936 = vmatpush1.msra.mxu0 0.0
      %1937 = vmatprep.subr.mxu0 0.0
      %1938 = vmatpush1.msra.mxu0 0.0
      %1939 = vmatprep.subr.mxu0 0.0
      %1940 = vmatpush1.msra.mxu0 0.0
      %1941 = vmatprep.subr.mxu0 0.0
      %1942 = vmatpush1.msra.mxu0 0.0
      %1943 = vmatprep.subr.mxu0 0.0
      %1944 = vmatpush1.msra.mxu0 0.0
      %1945 = vmatprep.subr.mxu0 0.0
      %1946 = vmatpush1.msra.mxu0 0.0
      %1947 = vmatprep.subr.mxu0 0.0
      %1948 = vmatpush1.msra.mxu0 %v1912
      %1949 = vmatprep.subr.mxu0 0.0
      %1950 = vmatpush1.msra.mxu0 %v1911
      %1951 = vmatprep.subr.mxu0 0.0
      %1952 = vmatpush1.msra.mxu0 %v1910
      %1953 = vmatprep.subr.mxu0 0.0
      %1954 = vmatpush1.msra.mxu0 %v1909
      %1955 = vmatprep.subr.mxu0 0.0
      %1956 = vmatpush2.msra.mxu0 0.0
      %1957 = vmatprep.subr.mxu0 0.0
      %1958 = vmatpush2.msra.mxu0 0.0
      %1959 = vmatprep.subr.mxu0 0.0
      %1960 = vmatpush2.msra.mxu0 0.0
      %1961 = vmatprep.subr.mxu0 0.0
      %1962 = vmatpush2.msra.mxu0 0.0
      %1963 = vmatprep.subr.mxu0 0.0
      %1964 = vmatpush2.msra.mxu0 0.0
      %1965 = vmatprep.subr.mxu0 0.0
      %1966 = vmatpush2.msra.mxu0 0.0
      %1967 = vmatprep.subr.mxu0 0.0
      %1968 = vmatpush2.msra.mxu0 0.0
      %1969 = vmatprep.subr.mxu0 0.0
      %1970 = vmatpush2.msra.mxu0 0.0
      %1971 = vmatprep.subr.mxu0 0.0
      %1972 = vmatpush2.msra.mxu0 0.0
      %1973 = vmatprep.subr.mxu0 0.0
      %1974 = vmatpush2.msra.mxu0 0.0
      %1975 = vmatprep.subr.mxu0 0.0
      %1976 = vmatpush2.msra.mxu0 0.0
      %1977 = vmatprep.subr.mxu0 0.0
      %1978 = vmatpush2.msra.mxu0 0.0
      %1979 = vmatprep.subr.mxu0 0.0
      %1980 = vmatpush2.msra.mxu0 0.0
      %1981 = vmatprep.subr.mxu0 0.0
      %1982 = vmatpush2.msra.mxu0 0.0
      %1983 = vmatprep.subr.mxu0 0.0
      %1984 = vmatpush2.msra.mxu0 0.0
      %1985 = vmatprep.subr.mxu0 0.0
      %1986 = vmatpush2.msra.mxu0 0.0
      %1987 = vmatprep.mubr.f32.mxu0 0.0
      %1988 = vmatmul.mubr.f32.gmra.mxu0 %v1921
      %v1989 = vpop.f32.mrf.mxu0
      %v1990 = vadd.f32 %v1918, %v1989
      %v1991 = vpop.f32.mrf.mxu0
      %1992 = vdwg.mxu0
      %v1993 = vadd.f32 %v534, %v1990
      %v1994 = vsel %vm548, %v1993, 0.0
      %1995 = vadd.xlane.f32.xlu0 %v1994
      %v1996 = vpop.xlane.xlu0 %1995
      %v1997 = vrcp.pop 32.0
      %v1998 = vmul.f32 %v1996, %v1997
      %v1999 = vsub.f32 %v1993, %v1998
      %v2000 = vmul.f32 %v1999, %v1999
      %v2001 = vsel %vm548, %v2000, 0.0
      %2002 = vadd.xlane.f32.xlu0 %v2001
      %v2003 = vpop.xlane.xlu0 %2002
      %v2004 = vmul.f32 %v2003, %v1997
      %v2005 = vadd.f32 %v2004, 1e-05
      %v2006 = vrsqrt.pop %v2005
      %v2007 = vmul.f32 %v1999, %v2006
      %v2008 = vld [vmem:[%s12] sm:$0x1]
      %v2010 = vlaneseq
      %v2011 = vshrl.u32 %v2010, 7
      %v2012 = vsub.s32 0, %v2011
      %v2013 = vrot.slane %v2008, %v2012
      %v2015 = vmul.f32 %v2007, %v2013
      %v2016 = vld [vmem:[%s13] sm:$0x1]
      %v2018 = vlaneseq
      %v2019 = vshrl.u32 %v2018, 7
      %v2020 = vsub.s32 0, %v2019
      %v2021 = vrot.slane %v2016, %v2020
      %v2023 = vadd.f32 %v2015, %v2021
      %v2024 = vld [vmem:[%s8] sm:$0xff]
      %v2025 = vld [vmem:[%s8 + $0x8] sm:$0xff]
      %v2026 = vld [vmem:[%s8 + $0x10] sm:$0xff]
      %v2027 = vld [vmem:[%s8 + $0x18] sm:$0xff]
      %v2028 = vld [vmem:[%s9] sm:$0x1]
      %v2030 = vlaneseq
      %v2031 = vshrl.u32 %v2030, 7
      %v2032 = vsub.s32 0, %v2031
      %v2033 = vrot.slane %v2028, %v2032
      %v2036 = vsel %vm548, %v2023, 0
      %2038 = vmatprep.subr.mxu0 0.0
      %2039 = vmatpush1.msra.mxu0 0.0
      %2040 = vmatprep.subr.mxu0 0.0
      %2041 = vmatpush1.msra.mxu0 0.0
      %2042 = vmatprep.subr.mxu0 0.0
      %2043 = vmatpush1.msra.mxu0 0.0
      %2044 = vmatprep.subr.mxu0 0.0
      %2045 = vmatpush1.msra.mxu0 0.0
      %2046 = vmatprep.subr.mxu0 0.0
      %2047 = vmatpush1.msra.mxu0 0.0
      %2048 = vmatprep.subr.mxu0 0.0
      %2049 = vmatpush1.msra.mxu0 0.0
      %2050 = vmatprep.subr.mxu0 0.0
      %2051 = vmatpush1.msra.mxu0 0.0
      %2052 = vmatprep.subr.mxu0 0.0
      %2053 = vmatpush1.msra.mxu0 0.0
      %2054 = vmatprep.subr.mxu0 0.0
      %2055 = vmatpush1.msra.mxu0 0.0
      %2056 = vmatprep.subr.mxu0 0.0
      %2057 = vmatpush1.msra.mxu0 0.0
      %2058 = vmatprep.subr.mxu0 0.0
      %2059 = vmatpush1.msra.mxu0 0.0
      %2060 = vmatprep.subr.mxu0 0.0
      %2061 = vmatpush1.msra.mxu0 0.0
      %2062 = vmatprep.subr.mxu0 0.0
      %2063 = vmatpush1.msra.mxu0 %v2027
      %2064 = vmatprep.subr.mxu0 0.0
      %2065 = vmatpush1.msra.mxu0 %v2026
      %2066 = vmatprep.subr.mxu0 0.0
      %2067 = vmatpush1.msra.mxu0 %v2025
      %2068 = vmatprep.subr.mxu0 0.0
      %2069 = vmatpush1.msra.mxu0 %v2024
      %2070 = vmatprep.subr.mxu0 0.0
      %2071 = vmatpush2.msra.mxu0 0.0
      %2072 = vmatprep.subr.mxu0 0.0
      %2073 = vmatpush2.msra.mxu0 0.0
      %2074 = vmatprep.subr.mxu0 0.0
      %2075 = vmatpush2.msra.mxu0 0.0
      %2076 = vmatprep.subr.mxu0 0.0
      %2077 = vmatpush2.msra.mxu0 0.0
      %2078 = vmatprep.subr.mxu0 0.0
      %2079 = vmatpush2.msra.mxu0 0.0
      %2080 = vmatprep.subr.mxu0 0.0
      %2081 = vmatpush2.msra.mxu0 0.0
      %2082 = vmatprep.subr.mxu0 0.0
      %2083 = vmatpush2.msra.mxu0 0.0
      %2084 = vmatprep.subr.mxu0 0.0
      %2085 = vmatpush2.msra.mxu0 0.0
      %2086 = vmatprep.subr.mxu0 0.0
      %2087 = vmatpush2.msra.mxu0 0.0
      %2088 = vmatprep.subr.mxu0 0.0
      %2089 = vmatpush2.msra.mxu0 0.0
      %2090 = vmatprep.subr.mxu0 0.0
      %2091 = vmatpush2.msra.mxu0 0.0
      %2092 = vmatprep.subr.mxu0 0.0
      %2093 = vmatpush2.msra.mxu0 0.0
      %2094 = vmatprep.subr.mxu0 0.0
      %2095 = vmatpush2.msra.mxu0 0.0
      %2096 = vmatprep.subr.mxu0 0.0
      %2097 = vmatpush2.msra.mxu0 0.0
      %2098 = vmatprep.subr.mxu0 0.0
      %2099 = vmatpush2.msra.mxu0 0.0
      %2100 = vmatprep.subr.mxu0 0.0
      %2101 = vmatpush2.msra.mxu0 0.0
      %2102 = vmatprep.mubr.f32.mxu0 0.0
      %2103 = vmatmul.mubr.f32.gmra.mxu0 %v2036
      %v2104 = vpop.f32.mrf.mxu0
      %v2105 = vadd.f32 %v2033, %v2104
      %v2106 = vpop.f32.mrf.mxu0
      %2107 = vdwg.mxu0
      %v2108 = vmax.f32 %v2105, 0.0
      %v2109 = vld [vmem:[%s10] sm:$0xff]
      %v2110 = vld [vmem:[%s10 + $0x8] sm:$0xff]
      %v2111 = vld [vmem:[%s10 + $0x10] sm:$0xff]
      %v2112 = vld [vmem:[%s10 + $0x18] sm:$0xff]
      %v2113 = vld [vmem:[%s10 + $0x20] sm:$0xff]
      %v2114 = vld [vmem:[%s10 + $0x28] sm:$0xff]
      %v2115 = vld [vmem:[%s10 + $0x30] sm:$0xff]
      %v2116 = vld [vmem:[%s10 + $0x38] sm:$0xff]
      %v2117 = vld [vmem:[%s11] sm:$0x1]
      %v2119 = vlaneseq
      %v2120 = vshrl.u32 %v2119, 7
      %v2121 = vsub.s32 0, %v2120
      %v2122 = vrot.slane %v2117, %v2121
      %vm2124 = vcmask 523264
      %v2126 = vsel %vm2124, %v2108, 0
      %2128 = vmatprep.subr.mxu0 0.0
      %2129 = vmatpush1.msra.mxu0 0.0
      %2130 = vmatprep.subr.mxu0 0.0
      %2131 = vmatpush1.msra.mxu0 0.0
      %2132 = vmatprep.subr.mxu0 0.0
      %2133 = vmatpush1.msra.mxu0 0.0
      %2134 = vmatprep.subr.mxu0 0.0
      %2135 = vmatpush1.msra.mxu0 0.0
      %2136 = vmatprep.subr.mxu0 0.0
      %2137 = vmatpush1.msra.mxu0 0.0
      %2138 = vmatprep.subr.mxu0 0.0
      %2139 = vmatpush1.msra.mxu0 0.0
      %2140 = vmatprep.subr.mxu0 0.0
      %2141 = vmatpush1.msra.mxu0 0.0
      %2142 = vmatprep.subr.mxu0 0.0
      %2143 = vmatpush1.msra.mxu0 0.0
      %2144 = vmatprep.subr.mxu0 0.0
      %2145 = vmatpush1.msra.mxu0 %v2116
      %2146 = vmatprep.subr.mxu0 0.0
      %2147 = vmatpush1.msra.mxu0 %v2115
      %2148 = vmatprep.subr.mxu0 0.0
      %2149 = vmatpush1.msra.mxu0 %v2114
      %2150 = vmatprep.subr.mxu0 0.0
      %2151 = vmatpush1.msra.mxu0 %v2113
      %2152 = vmatprep.subr.mxu0 0.0
      %2153 = vmatpush1.msra.mxu0 %v2112
      %2154 = vmatprep.subr.mxu0 0.0
      %2155 = vmatpush1.msra.mxu0 %v2111
      %2156 = vmatprep.subr.mxu0 0.0
      %2157 = vmatpush1.msra.mxu0 %v2110
      %2158 = vmatprep.subr.mxu0 0.0
      %2159 = vmatpush1.msra.mxu0 %v2109
      %2160 = vmatprep.subr.mxu0 0.0
      %2161 = vmatpush2.msra.mxu0 0.0
      %2162 = vmatprep.subr.mxu0 0.0
      %2163 = vmatpush2.msra.mxu0 0.0
      %2164 = vmatprep.subr.mxu0 0.0
      %2165 = vmatpush2.msra.mxu0 0.0
      %2166 = vmatprep.subr.mxu0 0.0
      %2167 = vmatpush2.msra.mxu0 0.0
      %2168 = vmatprep.subr.mxu0 0.0
      %2169 = vmatpush2.msra.mxu0 0.0
      %2170 = vmatprep.subr.mxu0 0.0
      %2171 = vmatpush2.msra.mxu0 0.0
      %2172 = vmatprep.subr.mxu0 0.0
      %2173 = vmatpush2.msra.mxu0 0.0
      %2174 = vmatprep.subr.mxu0 0.0
      %2175 = vmatpush2.msra.mxu0 0.0
      %2176 = vmatprep.subr.mxu0 0.0
      %2177 = vmatpush2.msra.mxu0 0.0
      %2178 = vmatprep.subr.mxu0 0.0
      %2179 = vmatpush2.msra.mxu0 0.0
      %2180 = vmatprep.subr.mxu0 0.0
      %2181 = vmatpush2.msra.mxu0 0.0
      %2182 = vmatprep.subr.mxu0 0.0
      %2183 = vmatpush2.msra.mxu0 0.0
      %2184 = vmatprep.subr.mxu0 0.0
      %2185 = vmatpush2.msra.mxu0 0.0
      %2186 = vmatprep.subr.mxu0 0.0
      %2187 = vmatpush2.msra.mxu0 0.0
      %2188 = vmatprep.subr.mxu0 0.0
      %2189 = vmatpush2.msra.mxu0 0.0
      %2190 = vmatprep.subr.mxu0 0.0
      %2191 = vmatpush2.msra.mxu0 0.0
      %2192 = vmatprep.mubr.f32.mxu0 0.0
      %2193 = vmatmul.mubr.f32.gmra.mxu0 %v2126
      %v2194 = vpop.f32.mrf.mxu0
      %v2195 = vadd.f32 %v2122, %v2194
      %v2196 = vpop.f32.mrf.mxu0
      %2197 = vdwg.mxu0
      %v2198 = vadd.f32 %v2023, %v2195
      %v2199 = vsel %vm548, %v2198, 0.0
      %2200 = vadd.xlane.f32.xlu0 %v2199
      %v2201 = vpop.xlane.xlu0 %2200
      %v2202 = vmul.f32 %v2201, %v1997
      %v2203 = vsub.f32 %v2198, %v2202
      %v2204 = vmul.f32 %v2203, %v2203
      %v2205 = vsel %vm548, %v2204, 0.0
      %2206 = vadd.xlane.f32.xlu0 %v2205
      %v2207 = vpop.xlane.xlu0 %2206
      %v2208 = vmul.f32 %v2207, %v1997
      %v2209 = vadd.f32 %v2208, 1e-05
      %v2210 = vrsqrt.pop %v2209
      %v2211 = vmul.f32 %v2203, %v2210
      %v2212 = vld [vmem:[%s14] sm:$0x1]
      %v2214 = vlaneseq
      %v2215 = vshrl.u32 %v2214, 7
      %v2216 = vsub.s32 0, %v2215
      %v2217 = vrot.slane %v2212, %v2216
      %v2219 = vmul.f32 %v2211, %v2217
      %v2220 = vld [vmem:[%s15] sm:$0x1]
      %v2222 = vlaneseq
      %v2223 = vshrl.u32 %v2222, 7
      %v2224 = vsub.s32 0, %v2223
      %v2225 = vrot.slane %v2220, %v2224
      %v2227 = vadd.f32 %v2219, %v2225
      %2228 = vst.msk [vmem:[%s533] sm:$0xff] %vm548, %v2227
      %p2229 = scmp.lt.s32.totalorder %s27, 1
      %s2230 = scalar_select %p2229, %s27, 1
      %s2231 = smul.addr %s2230, 8
      %s2232 = scalar_lea.vmem %s16, %s2231
      // Predicated region
      $region85: #{transformer_encoder_layer.1} parent=83 // pred_check
        %p2233 = pneg %p391
      $region86: #{transformer_encoder_layer.1} parent=83 // pred_check_branch
        %2235 = sbr.rel (%p2233) target = $region88
      $region87: #{transformer_encoder_layer.1} parent=83 // pred_region
        _
      $region88: #{transformer_encoder_layer.1} parent=83 // pred_fallthru
        _
    $region84: #{transformer_encoder_layer.1} parent=5 // pred_fallthru
      _
    %p2236 = scmp.le.s32.totalorder 2, %s22
    // Predicated region
    $region89: #{transformer_encoder_layer.1} parent=5 // pred_check
      %p2237 = pneg %p2236
    $region90: #{transformer_encoder_layer.1} parent=5 // pred_check_branch
      %2239 = sbr.rel (%p2237) target = $region92
    $region91: #{transformer_encoder_layer.1} parent=5 // pred_region
      %s2240 = ssub.s32 %s22, 2
      // Predicated region
      $region93: #{transformer_encoder_layer.1} parent=91 // pred_check
        %p2241 = pneg %p397
      $region94: #{transformer_encoder_layer.1} parent=91 // pred_check_branch
        %2243 = sbr.rel (%p2241) target = $region96
      $region95: #{transformer_encoder_layer.1} parent=91 // pred_region
        %p2244 = scmp.lt.s32.totalorder %s28, 1
        %s2245 = scalar_select %p2244, %s28, 1
        %s2246 = smul.addr %s2245, 8
        %s2247 = scalar_lea.vmem %s16, %s2246
      $region96: #{transformer_encoder_layer.1} parent=91 // pred_fallthru
        _
    $region92: #{transformer_encoder_layer.1} parent=5 // pred_fallthru
      _
  $region6: #{transformer_encoder_layer.1} parent=0 // loop_footer
    %s26 = sadd.s32 1, %s22
  $region7: #{transformer_encoder_layer.1} parent=0 // loop_footer_branch
    %21 = sbr.rel target = $region3
  $region8: #{transformer_encoder_layer.1} parent=0 // loop_exit
    _

</llo_original>
